<compile_context>
chip_gen: v7x
topology: tpu7x:2x2x1
jax: 0.10.0
libtpu: 0.0.40
codegen_flags: <defaults>
</compile_context>

<pallas_src>
import jax
import jax.numpy as jnp
from jax import lax
from jax.experimental import pallas as pl
from jax.experimental.pallas import tpu as pltpu

EPS_GN = 1e-5      # GraphNorm eps
EPS_BN = 1e-5      # BatchNorm1d eps
SELU_ALPHA = 1.6732632423543772848170429916717
SELU_SCALE = 1.0507009873554804934193349852946
NEG_INF = -1e30

# ---- stacked-parameter index layout -----------------------------------------
# W_HH  [12, H, H]: 0..4 conv2 (w1i, w1j, w2f, w3f, wsc)
#                   5..9 conv3 (w1i, w1j, w2f, w3f, wsc)
#                   10 dense1(bn0-folded), 11 dense2
# B_H   [16, 1, H]: 0 b_rel
#                   1..6  conv2 (b1, b2f, b3f, s3, t3, bsc)
#                   7..12 conv3 (b1, b2f, b3f, s3, t3, bsc)
#                   13 bd1(bn0-folded), 14 bd2, 15 zero pad
W_C2, W_C3, W_D1, W_D2 = 0, 5, 10, 11
B_REL, B_C2, B_C3, B_D1, B_D2 = 0, 1, 7, 13, 14


# ----------------------------- in-kernel helpers -----------------------------

def _elu(x):
    # Clamp before exp so the unselected where-branch never produces inf.
    return jnp.where(x > 0, x, jnp.exp(jnp.minimum(x, 0.0)) - 1.0)


def _selu(x):
    return SELU_SCALE * jnp.where(
        x > 0, x, SELU_ALPHA * (jnp.exp(jnp.minimum(x, 0.0)) - 1.0))


# --------------------------- fused GraphNet kernel ---------------------------

def _graphnet_kernel(x_ref, adj_ref, gathers_ref, gdstT_ref,
                     gn_ref, wc1_ref, whh_ref, bh_ref, wo_ref, bo_ref,
                     out_ref):
    x = x_ref[...]                       # [N, C]
    adj = adj_ref[...]                   # [N, N]   A[i,j] = #edges j->i
    gdst = gathers_ref[0]                # [E, N]   x_i gather (dst one-hot)
    gsrc = gathers_ref[1]                # [E, N]   x_j gather (src one-hot)
    gdst_t = gdstT_ref[...]              # [N, E]   scatter-mean (rows prescaled 1/deg)

    # ---- GraphNorm (single graph, batch=None) ----
    gn_w, gn_b, gn_ms = gn_ref[0], gn_ref[1], gn_ref[2]          # [1, C] each
    mean = jnp.mean(x, axis=0, keepdims=True)
    xc = x - mean * gn_ms
    var = jnp.mean(xc * xc, axis=0, keepdims=True)
    xn = xc * (gn_w * lax.rsqrt(var + EPS_GN)) + gn_b

    # ---- GraphConv (aggr='add', edge_weight=None) + F.elu ----
    agg0 = jnp.dot(adj, xn, preferred_element_type=jnp.float32)
    h0 = (jnp.dot(agg0, wc1_ref[0], preferred_element_type=jnp.float32)
          + bh_ref[B_REL]
          + jnp.dot(xn, wc1_ref[1], preferred_element_type=jnp.float32))
    conv1 = _elu(h0)

    # ---- DynamicEdgeConv (EdgeConv mean-aggr + shortcut), eval semantics ----
    def edgeconv(xin, wbase, bbase):
        w1i, w1j = whh_ref[wbase + 0], whh_ref[wbase + 1]
        w2, w3, wsc = whh_ref[wbase + 2], whh_ref[wbase + 3], whh_ref[wbase + 4]
        b1, b2, b3 = bh_ref[bbase + 0], bh_ref[bbase + 1], bh_ref[bbase + 2]
        s3, t3, bsc = bh_ref[bbase + 3], bh_ref[bbase + 4], bh_ref[bbase + 5]
        # HxH message weights applied at [N, H] BEFORE the [E, N] gathers.
        hi = jnp.dot(xin, w1i, preferred_element_type=jnp.float32)      # [N, H]
        hj = jnp.dot(xin, w1j, preferred_element_type=jnp.float32)      # [N, H]
        m = (jnp.dot(gdst, hi, preferred_element_type=jnp.float32)
             + jnp.dot(gsrc, hj, preferred_element_type=jnp.float32) + b1)   # [E, H]
        m = jnp.maximum(m, 0.0)        # ReLU; BN1 folded into (w2,b2); Dropout(eval)=id
        m = jnp.maximum(jnp.dot(m, w2, preferred_element_type=jnp.float32) + b2, 0.0)
        m = jnp.maximum(jnp.dot(m, w3, preferred_element_type=jnp.float32) + b3, 0.0)
        m = m * s3 + t3                # BN3 (eval); Dropout(eval)=id
        # aggr='mean': scatter matmul with 1/deg pre-folded into gdst_t rows
        agg = jnp.dot(gdst_t, m, preferred_element_type=jnp.float32)    # [N, H]
        # shortcut: Linear + ReLU
        sc = jnp.maximum(
            jnp.dot(xin, wsc, preferred_element_type=jnp.float32) + bsc, 0.0)
        return agg + sc

    conv2 = edgeconv(conv1, W_C2, B_C2)
    conv3 = edgeconv(conv2, W_C3, B_C3)

    # ---- global_mean_pool + (bn0 folded into dense1) + SELU MLP + log_softmax ----
    pooled = jnp.mean(conv1 + conv2 + conv3, axis=0, keepdims=True)     # [1, H]
    # TODO(synk): F.alpha_dropout(p=0.4) is stochastic; eval semantics -> identity.
    h = _selu(jnp.dot(pooled, whh_ref[W_D1], preferred_element_type=jnp.float32)
              + bh_ref[B_D1])
    h = _selu(jnp.dot(h, whh_ref[W_D2], preferred_element_type=jnp.float32)
              + bh_ref[B_D2])
    logits = jnp.dot(h, wo_ref[...], preferred_element_type=jnp.float32) + bo_ref[...]
    # log_softmax over the lane-padded row: padded columns carry bias -1e30 -> exp == 0
    mmax = jnp.max(logits, axis=1, keepdims=True)
    z = logits - mmax
    out_ref[...] = z - jnp.log(jnp.sum(jnp.exp(z), axis=1, keepdims=True))


def make_graphnet_forward(n_args, out_pad):
    def fwd(*args):
        return pl.pallas_call(
            _graphnet_kernel,
            out_shape=jax.ShapeDtypeStruct((1, out_pad), jnp.float32),
            in_specs=[pl.BlockSpec(memory_space=pltpu.MemorySpace.VMEM)] * n_args,
            out_specs=pl.BlockSpec(memory_space=pltpu.MemorySpace.VMEM),
        )(*args)
    return jax.jit(fwd)


# --------------------- parameter construction (plain JAX) --------------------

def linear_params(key, fan_in, fan_out):
    kw, kb = jax.random.split(key)
    bound = 1.0 / jnp.sqrt(jnp.float32(fan_in))
    w = jax.random.uniform(kw, (fan_in, fan_out), jnp.float32, -bound, bound)
    b = jax.random.uniform(kb, (1, fan_out), jnp.float32, -bound, bound)
    return w, b


def bn_eval_scale_shift(H):
    # TODO(synk): assumes default-init running stats (mean=0, var=1, gamma=1, beta=0);
    # re-fold from real running stats for trained weights.
    scale = jnp.full((1, H), 1.0 / jnp.sqrt(1.0 + EPS_BN), jnp.float32)
    shift = jnp.zeros((1, H), jnp.float32)
    return scale, shift


def make_edgeconv_params(key, H):
    ks = jax.random.split(key, 4)
    w1, b1 = linear_params(ks[0], 2 * H, H)
    w2, b2 = linear_params(ks[1], H, H)
    w3, b3 = linear_params(ks[2], H, H)
    wsc, bsc = linear_params(ks[3], H, H)
    s, t = bn_eval_scale_shift(H)
    return dict(w1=w1, b1=b1, w2=w2, b2=b2, w3=w3, b3=b3,
                s1=s, t1=t, s2=s, t2=t, s3=s, t3=t, wsc=wsc, bsc=bsc)


# ----------------- one-time preparation (hoisted out of forward) -------------

def build_graph_arrays(edge_index, N):
    # TODO(synk): dense one-hot gathers are fine for small graphs; for large E/N
    # replace with scalar-prefetch / tiled index gathers (mandatory on v7x VMEM).
    src, dst = edge_index[0], edge_index[1]
    # GraphConv aggr='add' (edge_weight=None -> 1): A[i, j] = #edges j -> i
    adj = jnp.zeros((N, N), jnp.float32).at[dst, src].add(1.0)
    gsrc = jax.nn.one_hot(src, N, dtype=jnp.float32)      # x_j gather  [E, N]
    gdst = jax.nn.one_hot(dst, N, dtype=jnp.float32)      # x_i gather  [E, N]
    deg = jnp.zeros((N,), jnp.float32).at[dst].add(1.0)
    inv_deg = jnp.where(deg > 0, 1.0 / jnp.maximum(deg, 1.0), 0.0)[:, None]   # [N, 1]
    gdst_t = gdst.T * inv_deg                              # scatter-MEAN matrix [N, E]
    gathers = jnp.stack([gdst, gsrc])                      # [2, E, N]
    return adj, gathers, gdst_t


def fold_edgeconv(p, H):
    """Re-associate the message matmul and fold eval-BatchNorms into the next Linear."""
    w1a, w1b = p["w1"][:H], p["w1"][H:]
    w1i = w1a - w1b                       # cat([x_i, x_j-x_i])@W1 == x_i@(W1a-W1b)+x_j@W1b
    w1j = w1b
    w2f = p["w2"] * p["s1"].reshape(-1, 1)    # BN1 (post-ReLU affine) folded into Linear2
    b2f = p["t1"] @ p["w2"] + p["b2"]
    w3f = p["w3"] * p["s2"].reshape(-1, 1)    # BN2 folded into Linear3
    b3f = p["t2"] @ p["w3"] + p["b3"]
    return dict(w1i=w1i, w1j=w1j, b1=p["b1"], w2=w2f, b2=b2f, w3=w3f, b3=b3f,
                s3=p["s3"], t3=p["t3"], wsc=p["wsc"], bsc=p["bsc"])


def prepare_inputs(x, edge_index, params, out_pad):
    N, _ = x.shape
    H = params["conv1"][0].shape[1]
    O = params["head"]["wo"].shape[1]
    adj, gathers, gdst_t = build_graph_arrays(edge_index, N)

    gn_w, gn_b, gn_ms = params["gn0"]
    gn = jnp.stack([gn_w, gn_b, gn_ms])                     # [3, 1, C]

    w_rel, b_rel, w_root = params["conv1"]
    wc1 = jnp.stack([w_rel, w_root])                        # [2, C, H]

    c2 = fold_edgeconv(params["conv2"], H)
    c3 = fold_edgeconv(params["conv3"], H)
    hd = params["head"]
    # fold eval-BatchNorm bn0 into dense1
    wd1f = hd["wd1"] * hd["bns"].reshape(-1, 1)
    bd1f = hd["bnt"] @ hd["wd1"] + hd["bd1"]

    # stacked HxH weights   (order must match W_* constants)
    whh = jnp.stack([c2["w1i"], c2["w1j"], c2["w2"], c2["w3"], c2["wsc"],
                     c3["w1i"], c3["w1j"], c3["w2"], c3["w3"], c3["wsc"],
                     wd1f, hd["wd2"]])                      # [12, H, H]
    # stacked [1,H] rows    (order must match B_* constants); padded to 16 rows
    bh = jnp.stack([b_rel,
                    c2["b1"], c2["b2"], c2["b3"], c2["s3"], c2["t3"], c2["bsc"],
                    c3["b1"], c3["b2"], c3["b3"], c3["s3"], c3["t3"], c3["bsc"],
                    bd1f, hd["bd2"],
                    jnp.zeros((1, H), jnp.float32)])        # [16, 1, H]

    # lane-dense output: pad O -> out_pad; padded bias -1e30 removes them from softmax
    wo_p = jnp.pad(hd["wo"], ((0, 0), (0, out_pad - O)))
    bo_p = jnp.full((1, out_pad), NEG_INF, jnp.float32).at[:, :O].set(hd["bo"][0])

    return (x, adj, gathers, gdst_t, gn, wc1, whh, bh, wo_p, bo_p)


# ---------------- plain-JAX eval-mode reference (un-folded params) -----------

def graphnet_reference(x, edge_index, params):
    src, dst = edge_index[0], edge_index[1]
    N = x.shape[0]

    gn_w, gn_b, gn_ms = params["gn0"]
    mean = jnp.mean(x, axis=0, keepdims=True)
    xc = x - mean * gn_ms
    var = jnp.mean(xc * xc, axis=0, keepdims=True)
    xn = xc / jnp.sqrt(var + EPS_GN) * gn_w + gn_b

    w_rel, b_rel, w_root = params["conv1"]
    agg = jnp.zeros((N, xn.shape[1]), jnp.float32).at[dst].add(xn[src])
    conv1 = jax.nn.elu(agg @ w_rel + b_rel + xn @ w_root)

    def bn_eval(h):  # running_mean=0, running_var=1, gamma=1, beta=0
        return h / jnp.sqrt(1.0 + EPS_BN)

    def edgeconv_ref(xin, p):
        x_i, x_j = xin[dst], xin[src]
        t = jnp.concatenate([x_i, x_j - x_i], axis=1)
        m = bn_eval(jnp.maximum(t @ p["w1"] + p["b1"], 0.0))
        m = bn_eval(jnp.maximum(m @ p["w2"] + p["b2"], 0.0))
        m = bn_eval(jnp.maximum(m @ p["w3"] + p["b3"], 0.0))
        summed = jnp.zeros((N, m.shape[1]), jnp.float32).at[dst].add(m)
        cnt = jnp.zeros((N,), jnp.float32).at[dst].add(1.0)
        aggm = summed / jnp.maximum(cnt, 1.0)[:, None]
        sc = jnp.maximum(xin @ p["wsc"] + p["bsc"], 0.0)
        return aggm + sc

    conv2 = edgeconv_ref(conv1, params["conv2"])
    conv3 = edgeconv_ref(conv2, params["conv3"])
    pooled = bn_eval(jnp.mean(conv1 + conv2 + conv3, axis=0, keepdims=True))
    hd = params["head"]
    h = jax.nn.selu(pooled @ hd["wd1"] + hd["bd1"])
    h = jax.nn.selu(h @ hd["wd2"] + hd["bd2"])
    logits = h @ hd["wo"] + hd["bo"]
    return jax.nn.log_softmax(logits, axis=1)


# ----------------------------------- main ------------------------------------

if __name__ == "__main__":
    N, C, H, O = 16, 8, 32, 8      # nodes, in_channels, hidden_channels, out_channels
    OUT_PAD = 128                  # lane-dense output width

    key = jax.random.PRNGKey(0)
    k_x, k_c1, k_c2, k_c3, k_d1, k_d2, k_out = jax.random.split(key, 7)

    # node features
    x = jax.random.normal(k_x, (N, C), jnp.float32)

    # deterministic directed graph: each node receives edges from i+1, i+2, i+5 (mod N)
    idx = jnp.arange(N)
    src = jnp.concatenate([(idx + 1) % N, (idx + 2) % N, (idx + 5) % N])
    dst = jnp.concatenate([idx, idx, idx])
    edge_index = jnp.stack([src, dst]).astype(jnp.int32)       # [2, E], E = 48
    # TODO(synk): dropout_edge / knn_graph are stochastic / dead code in eval;
    # edge_index is used as-is.

    # GraphNorm(in_channels): weight=1, bias=0, mean_scale=1 (default init)
    gn0 = (jnp.ones((1, C), jnp.float32),
           jnp.zeros((1, C), jnp.float32),
           jnp.ones((1, C), jnp.float32))

    # GraphConv(in_channels, hidden): lin_rel (w, b) + lin_root (w, no bias)
    w_rel, b_rel = linear_params(k_c1, C, H)
    w_root, _ = linear_params(jax.random.fold_in(k_c1, 1), C, H)

    bn0_s, bn0_t = bn_eval_scale_shift(H)
    wd1, bd1 = linear_params(k_d1, H, H)
    wd2, bd2 = linear_params(k_d2, H, H)
    wo, bo = linear_params(k_out, H, O)

    params = {
        "gn0": gn0,
        "conv1": (w_rel, b_rel, w_root),
        "conv2": make_edgeconv_params(k_c2, H),
        "conv3": make_edgeconv_params(k_c3, H),
        "head": dict(bns=bn0_s, bnt=bn0_t, wd1=wd1, bd1=bd1,
                     wd2=wd2, bd2=bd2, wo=wo, bo=bo),
    }

    # graph-matrix construction + BN/weight folding + stacking done ONCE, off the hot path
    flat_args = jax.block_until_ready(prepare_inputs(x, edge_index, params, OUT_PAD))

    forward = make_graphnet_forward(len(flat_args), OUT_PAD)
    out_padded = forward(*flat_args)                 # [1, OUT_PAD] (lane-dense store)
    out = jax.block_until_ready(out_padded)[:, :O]   # [1, O] log-probabilities

    ref = graphnet_reference(x, edge_index, params)

    assert out.shape == (1, O)
    assert bool(jnp.all(jnp.isfinite(out)))
    # log_softmax rows sum to 1 in prob space
    assert bool(jnp.allclose(jnp.sum(jnp.exp(out), axis=1), 1.0, atol=1e-4))
    # fused/folded kernel matches the plain-JAX eval-mode module
    assert bool(jnp.allclose(out, ref, atol=1e-3, rtol=1e-3))
    print("KERNEL_OK")
</pallas_src>

<mosaic_0001>
module attributes {stable_mosaic.version = 11 : i64} {
  func.func @_graphnet_kernel(%arg0: memref<16x8xf32, #tpu.memory_space<vmem>>, %arg1: memref<16x16xf32, #tpu.memory_space<vmem>>, %arg2: memref<2x48x16xf32, #tpu.memory_space<vmem>>, %arg3: memref<16x48xf32, #tpu.memory_space<vmem>>, %arg4: memref<3x1x8xf32, #tpu.memory_space<vmem>>, %arg5: memref<2x8x32xf32, #tpu.memory_space<vmem>>, %arg6: memref<12x32x32xf32, #tpu.memory_space<vmem>>, %arg7: memref<16x1x32xf32, #tpu.memory_space<vmem>>, %arg8: memref<32x128xf32, #tpu.memory_space<vmem>>, %arg9: memref<1x128xf32, #tpu.memory_space<vmem>>, %arg10: memref<1x128xf32, #tpu.memory_space<vmem>>) attributes {dimension_semantics = [], scalar_prefetch = 0 : i64, scratch_operands = 0 : i64, tpu.core_type = #tpu.core_type<tc>} {
    %c0 = arith.constant 0 : index
    %c0_0 = arith.constant 0 : index
    %0 = vector.load %arg0[%c0, %c0_0] : memref<16x8xf32, #tpu.memory_space<vmem>>, vector<16x8xf32>
    %c0_1 = arith.constant 0 : index
    %c0_2 = arith.constant 0 : index
    %1 = vector.load %arg1[%c0_1, %c0_2] : memref<16x16xf32, #tpu.memory_space<vmem>>, vector<16x16xf32>
    %c0_3 = arith.constant 0 : index
    %c0_4 = arith.constant 0 : index
    %c0_5 = arith.constant 0 : index
    %2 = vector.load %arg2[%c0_3, %c0_4, %c0_5] : memref<2x48x16xf32, #tpu.memory_space<vmem>>, vector<1x48x16xf32>
    %3 = vector.shape_cast %2 : vector<1x48x16xf32> to vector<48x16xf32>
    %c1 = arith.constant 1 : index
    %c0_6 = arith.constant 0 : index
    %c0_7 = arith.constant 0 : index
    %4 = vector.load %arg2[%c1, %c0_6, %c0_7] : memref<2x48x16xf32, #tpu.memory_space<vmem>>, vector<1x48x16xf32>
    %5 = vector.shape_cast %4 : vector<1x48x16xf32> to vector<48x16xf32>
    %c0_8 = arith.constant 0 : index
    %c0_9 = arith.constant 0 : index
    %6 = vector.load %arg3[%c0_8, %c0_9] : memref<16x48xf32, #tpu.memory_space<vmem>>, vector<16x48xf32>
    %c0_10 = arith.constant 0 : index
    %c0_11 = arith.constant 0 : index
    %c0_12 = arith.constant 0 : index
    %7 = vector.load %arg4[%c0_10, %c0_11, %c0_12] : memref<3x1x8xf32, #tpu.memory_space<vmem>>, vector<1x1x8xf32>
    %8 = vector.shape_cast %7 : vector<1x1x8xf32> to vector<1x8xf32>
    %c1_13 = arith.constant 1 : index
    %c0_14 = arith.constant 0 : index
    %c0_15 = arith.constant 0 : index
    %9 = vector.load %arg4[%c1_13, %c0_14, %c0_15] : memref<3x1x8xf32, #tpu.memory_space<vmem>>, vector<1x1x8xf32>
    %10 = vector.shape_cast %9 : vector<1x1x8xf32> to vector<1x8xf32>
    %c2 = arith.constant 2 : index
    %c0_16 = arith.constant 0 : index
    %c0_17 = arith.constant 0 : index
    %11 = vector.load %arg4[%c2, %c0_16, %c0_17] : memref<3x1x8xf32, #tpu.memory_space<vmem>>, vector<1x1x8xf32>
    %12 = vector.shape_cast %11 : vector<1x1x8xf32> to vector<1x8xf32>
    %cst = arith.constant dense<0.000000e+00> : vector<8xf32>
    %13 = vector.multi_reduction <add>, %0, %cst [0] : vector<16x8xf32> to vector<8xf32>
    %14 = vector.shape_cast %13 : vector<8xf32> to vector<1x8xf32>
    %cst_18 = arith.constant 1.600000e+01 : f32
    %15 = vector.broadcast %cst_18 : f32 to vector<1x8xf32>
    %16 = arith.divf %14, %15 : vector<1x8xf32>
    %17 = arith.mulf %16, %12 : vector<1x8xf32>
    %18 = vector.broadcast %17 : vector<1x8xf32> to vector<16x8xf32>
    %19 = arith.subf %0, %18 : vector<16x8xf32>
    %20 = arith.mulf %19, %19 : vector<16x8xf32>
    %cst_19 = arith.constant dense<0.000000e+00> : vector<8xf32>
    %21 = vector.multi_reduction <add>, %20, %cst_19 [0] : vector<16x8xf32> to vector<8xf32>
    %22 = vector.shape_cast %21 : vector<8xf32> to vector<1x8xf32>
    %cst_20 = arith.constant 1.600000e+01 : f32
    %23 = vector.broadcast %cst_20 : f32 to vector<1x8xf32>
    %24 = arith.divf %22, %23 : vector<1x8xf32>
    %cst_21 = arith.constant 9.99999974E-6 : f32
    %25 = vector.broadcast %cst_21 : f32 to vector<1x8xf32>
    %26 = arith.addf %24, %25 : vector<1x8xf32>
    %27 = math.rsqrt %26 : vector<1x8xf32>
    %28 = arith.mulf %8, %27 : vector<1x8xf32>
    %29 = vector.broadcast %28 : vector<1x8xf32> to vector<16x8xf32>
    %30 = arith.mulf %19, %29 : vector<16x8xf32>
    %31 = vector.broadcast %10 : vector<1x8xf32> to vector<16x8xf32>
    %32 = arith.addf %30, %31 : vector<16x8xf32>
    %cst_22 = arith.constant dense<0.000000e+00> : vector<16x8xf32>
    %33 = tpu.matmul %1, %32, %cst_22 {dimension_numbers = #tpu.dot_dimension_numbers<[1], [0], [0], [1], [0, 0, 1, 1], [], []>} : vector<16x16xf32>, vector<16x8xf32>, vector<16x8xf32> -> vector<16x8xf32>
    %c0_23 = arith.constant 0 : index
    %c0_24 = arith.constant 0 : index
    %c0_25 = arith.constant 0 : index
    %34 = vector.load %arg5[%c0_23, %c0_24, %c0_25] : memref<2x8x32xf32, #tpu.memory_space<vmem>>, vector<1x8x32xf32>
    %35 = vector.shape_cast %34 : vector<1x8x32xf32> to vector<8x32xf32>
    %cst_26 = arith.constant dense<0.000000e+00> : vector<16x32xf32>
    %36 = tpu.matmul %33, %35, %cst_26 {dimension_numbers = #tpu.dot_dimension_numbers<[1], [0], [0], [1], [0, 0, 1, 1], [], []>} : vector<16x8xf32>, vector<8x32xf32>, vector<16x32xf32> -> vector<16x32xf32>
    %c0_27 = arith.constant 0 : index
    %c0_28 = arith.constant 0 : index
    %c0_29 = arith.constant 0 : index
    %37 = vector.load %arg7[%c0_27, %c0_28, %c0_29] : memref<16x1x32xf32, #tpu.memory_space<vmem>>, vector<1x1x32xf32>
    %38 = vector.shape_cast %37 : vector<1x1x32xf32> to vector<1x32xf32>
    %39 = vector.broadcast %38 : vector<1x32xf32> to vector<16x32xf32>
    %40 = arith.addf %36, %39 : vector<16x32xf32>
    %c1_30 = arith.constant 1 : index
    %c0_31 = arith.constant 0 : index
    %c0_32 = arith.constant 0 : index
    %41 = vector.load %arg5[%c1_30, %c0_31, %c0_32] : memref<2x8x32xf32, #tpu.memory_space<vmem>>, vector<1x8x32xf32>
    %42 = vector.shape_cast %41 : vector<1x8x32xf32> to vector<8x32xf32>
    %cst_33 = arith.constant dense<0.000000e+00> : vector<16x32xf32>
    %43 = tpu.matmul %32, %42, %cst_33 {dimension_numbers = #tpu.dot_dimension_numbers<[1], [0], [0], [1], [0, 0, 1, 1], [], []>} : vector<16x8xf32>, vector<8x32xf32>, vector<16x32xf32> -> vector<16x32xf32>
    %44 = arith.addf %40, %43 : vector<16x32xf32>
    %cst_34 = arith.constant 0.000000e+00 : f32
    %45 = vector.broadcast %cst_34 : f32 to vector<16x32xf32>
    %46 = arith.cmpf ogt, %44, %45 : vector<16x32xf32>
    %cst_35 = arith.constant 0.000000e+00 : f32
    %47 = vector.broadcast %cst_35 : f32 to vector<16x32xf32>
    %48 = arith.minimumf %44, %47 : vector<16x32xf32>
    %49 = math.exp %48 : vector<16x32xf32>
    %cst_36 = arith.constant 1.000000e+00 : f32
    %50 = vector.broadcast %cst_36 : f32 to vector<16x32xf32>
    %51 = arith.subf %49, %50 : vector<16x32xf32>
    %52 = arith.select %46, %44, %51 : vector<16x32xi1>, vector<16x32xf32>
    %c0_37 = arith.constant 0 : index
    %c0_38 = arith.constant 0 : index
    %c0_39 = arith.constant 0 : index
    %53 = vector.load %arg6[%c0_37, %c0_38, %c0_39] : memref<12x32x32xf32, #tpu.memory_space<vmem>>, vector<1x32x32xf32>
    %54 = vector.shape_cast %53 : vector<1x32x32xf32> to vector<32x32xf32>
    %c1_40 = arith.constant 1 : index
    %c0_41 = arith.constant 0 : index
    %c0_42 = arith.constant 0 : index
    %55 = vector.load %arg6[%c1_40, %c0_41, %c0_42] : memref<12x32x32xf32, #tpu.memory_space<vmem>>, vector<1x32x32xf32>
    %56 = vector.shape_cast %55 : vector<1x32x32xf32> to vector<32x32xf32>
    %c2_43 = arith.constant 2 : index
    %c0_44 = arith.constant 0 : index
    %c0_45 = arith.constant 0 : index
    %57 = vector.load %arg6[%c2_43, %c0_44, %c0_45] : memref<12x32x32xf32, #tpu.memory_space<vmem>>, vector<1x32x32xf32>
    %58 = vector.shape_cast %57 : vector<1x32x32xf32> to vector<32x32xf32>
    %c3 = arith.constant 3 : index
    %c0_46 = arith.constant 0 : index
    %c0_47 = arith.constant 0 : index
    %59 = vector.load %arg6[%c3, %c0_46, %c0_47] : memref<12x32x32xf32, #tpu.memory_space<vmem>>, vector<1x32x32xf32>
    %60 = vector.shape_cast %59 : vector<1x32x32xf32> to vector<32x32xf32>
    %c4 = arith.constant 4 : index
    %c0_48 = arith.constant 0 : index
    %c0_49 = arith.constant 0 : index
    %61 = vector.load %arg6[%c4, %c0_48, %c0_49] : memref<12x32x32xf32, #tpu.memory_space<vmem>>, vector<1x32x32xf32>
    %62 = vector.shape_cast %61 : vector<1x32x32xf32> to vector<32x32xf32>
    %c1_50 = arith.constant 1 : index
    %c0_51 = arith.constant 0 : index
    %c0_52 = arith.constant 0 : index
    %63 = vector.load %arg7[%c1_50, %c0_51, %c0_52] : memref<16x1x32xf32, #tpu.memory_space<vmem>>, vector<1x1x32xf32>
    %64 = vector.shape_cast %63 : vector<1x1x32xf32> to vector<1x32xf32>
    %c2_53 = arith.constant 2 : index
    %c0_54 = arith.constant 0 : index
    %c0_55 = arith.constant 0 : index
    %65 = vector.load %arg7[%c2_53, %c0_54, %c0_55] : memref<16x1x32xf32, #tpu.memory_space<vmem>>, vector<1x1x32xf32>
    %66 = vector.shape_cast %65 : vector<1x1x32xf32> to vector<1x32xf32>
    %c3_56 = arith.constant 3 : index
    %c0_57 = arith.constant 0 : index
    %c0_58 = arith.constant 0 : index
    %67 = vector.load %arg7[%c3_56, %c0_57, %c0_58] : memref<16x1x32xf32, #tpu.memory_space<vmem>>, vector<1x1x32xf32>
    %68 = vector.shape_cast %67 : vector<1x1x32xf32> to vector<1x32xf32>
    %c4_59 = arith.constant 4 : index
    %c0_60 = arith.constant 0 : index
    %c0_61 = arith.constant 0 : index
    %69 = vector.load %arg7[%c4_59, %c0_60, %c0_61] : memref<16x1x32xf32, #tpu.memory_space<vmem>>, vector<1x1x32xf32>
    %70 = vector.shape_cast %69 : vector<1x1x32xf32> to vector<1x32xf32>
    %c5 = arith.constant 5 : index
    %c0_62 = arith.constant 0 : index
    %c0_63 = arith.constant 0 : index
    %71 = vector.load %arg7[%c5, %c0_62, %c0_63] : memref<16x1x32xf32, #tpu.memory_space<vmem>>, vector<1x1x32xf32>
    %72 = vector.shape_cast %71 : vector<1x1x32xf32> to vector<1x32xf32>
    %c6 = arith.constant 6 : index
    %c0_64 = arith.constant 0 : index
    %c0_65 = arith.constant 0 : index
    %73 = vector.load %arg7[%c6, %c0_64, %c0_65] : memref<16x1x32xf32, #tpu.memory_space<vmem>>, vector<1x1x32xf32>
    %74 = vector.shape_cast %73 : vector<1x1x32xf32> to vector<1x32xf32>
    %cst_66 = arith.constant dense<0.000000e+00> : vector<16x32xf32>
    %75 = tpu.matmul %52, %54, %cst_66 {dimension_numbers = #tpu.dot_dimension_numbers<[1], [0], [0], [1], [0, 0, 1, 1], [], []>} : vector<16x32xf32>, vector<32x32xf32>, vector<16x32xf32> -> vector<16x32xf32>
    %cst_67 = arith.constant dense<0.000000e+00> : vector<16x32xf32>
    %76 = tpu.matmul %52, %56, %cst_67 {dimension_numbers = #tpu.dot_dimension_numbers<[1], [0], [0], [1], [0, 0, 1, 1], [], []>} : vector<16x32xf32>, vector<32x32xf32>, vector<16x32xf32> -> vector<16x32xf32>
    %cst_68 = arith.constant dense<0.000000e+00> : vector<48x32xf32>
    %77 = tpu.matmul %3, %75, %cst_68 {dimension_numbers = #tpu.dot_dimension_numbers<[1], [0], [0], [1], [0, 0, 1, 1], [], []>} : vector<48x16xf32>, vector<16x32xf32>, vector<48x32xf32> -> vector<48x32xf32>
    %cst_69 = arith.constant dense<0.000000e+00> : vector<48x32xf32>
    %78 = tpu.matmul %5, %76, %cst_69 {dimension_numbers = #tpu.dot_dimension_numbers<[1], [0], [0], [1], [0, 0, 1, 1], [], []>} : vector<48x16xf32>, vector<16x32xf32>, vector<48x32xf32> -> vector<48x32xf32>
    %79 = arith.addf %77, %78 : vector<48x32xf32>
    %80 = vector.broadcast %64 : vector<1x32xf32> to vector<48x32xf32>
    %81 = arith.addf %79, %80 : vector<48x32xf32>
    %cst_70 = arith.constant 0.000000e+00 : f32
    %82 = vector.broadcast %cst_70 : f32 to vector<48x32xf32>
    %83 = arith.maximumf %81, %82 : vector<48x32xf32>
    %cst_71 = arith.constant dense<0.000000e+00> : vector<48x32xf32>
    %84 = tpu.matmul %83, %58, %cst_71 {dimension_numbers = #tpu.dot_dimension_numbers<[1], [0], [0], [1], [0, 0, 1, 1], [], []>} : vector<48x32xf32>, vector<32x32xf32>, vector<48x32xf32> -> vector<48x32xf32>
    %85 = vector.broadcast %66 : vector<1x32xf32> to vector<48x32xf32>
    %86 = arith.addf %84, %85 : vector<48x32xf32>
    %cst_72 = arith.constant 0.000000e+00 : f32
    %87 = vector.broadcast %cst_72 : f32 to vector<48x32xf32>
    %88 = arith.maximumf %86, %87 : vector<48x32xf32>
    %cst_73 = arith.constant dense<0.000000e+00> : vector<48x32xf32>
    %89 = tpu.matmul %88, %60, %cst_73 {dimension_numbers = #tpu.dot_dimension_numbers<[1], [0], [0], [1], [0, 0, 1, 1], [], []>} : vector<48x32xf32>, vector<32x32xf32>, vector<48x32xf32> -> vector<48x32xf32>
    %90 = vector.broadcast %68 : vector<1x32xf32> to vector<48x32xf32>
    %91 = arith.addf %89, %90 : vector<48x32xf32>
    %cst_74 = arith.constant 0.000000e+00 : f32
    %92 = vector.broadcast %cst_74 : f32 to vector<48x32xf32>
    %93 = arith.maximumf %91, %92 : vector<48x32xf32>
    %94 = vector.broadcast %70 : vector<1x32xf32> to vector<48x32xf32>
    %95 = arith.mulf %93, %94 : vector<48x32xf32>
    %96 = vector.broadcast %72 : vector<1x32xf32> to vector<48x32xf32>
    %97 = arith.addf %95, %96 : vector<48x32xf32>
    %cst_75 = arith.constant dense<0.000000e+00> : vector<16x32xf32>
    %98 = tpu.matmul %6, %97, %cst_75 {dimension_numbers = #tpu.dot_dimension_numbers<[1], [0], [0], [1], [0, 0, 1, 1], [], []>} : vector<16x48xf32>, vector<48x32xf32>, vector<16x32xf32> -> vector<16x32xf32>
    %cst_76 = arith.constant dense<0.000000e+00> : vector<16x32xf32>
    %99 = tpu.matmul %52, %62, %cst_76 {dimension_numbers = #tpu.dot_dimension_numbers<[1], [0], [0], [1], [0, 0, 1, 1], [], []>} : vector<16x32xf32>, vector<32x32xf32>, vector<16x32xf32> -> vector<16x32xf32>
    %100 = vector.broadcast %74 : vector<1x32xf32> to vector<16x32xf32>
    %101 = arith.addf %99, %100 : vector<16x32xf32>
    %cst_77 = arith.constant 0.000000e+00 : f32
    %102 = vector.broadcast %cst_77 : f32 to vector<16x32xf32>
    %103 = arith.maximumf %101, %102 : vector<16x32xf32>
    %104 = arith.addf %98, %103 : vector<16x32xf32>
    %c5_78 = arith.constant 5 : index
    %c0_79 = arith.constant 0 : index
    %c0_80 = arith.constant 0 : index
    %105 = vector.load %arg6[%c5_78, %c0_79, %c0_80] : memref<12x32x32xf32, #tpu.memory_space<vmem>>, vector<1x32x32xf32>
    %106 = vector.shape_cast %105 : vector<1x32x32xf32> to vector<32x32xf32>
    %c6_81 = arith.constant 6 : index
    %c0_82 = arith.constant 0 : index
    %c0_83 = arith.constant 0 : index
    %107 = vector.load %arg6[%c6_81, %c0_82, %c0_83] : memref<12x32x32xf32, #tpu.memory_space<vmem>>, vector<1x32x32xf32>
    %108 = vector.shape_cast %107 : vector<1x32x32xf32> to vector<32x32xf32>
    %c7 = arith.constant 7 : index
    %c0_84 = arith.constant 0 : index
    %c0_85 = arith.constant 0 : index
    %109 = vector.load %arg6[%c7, %c0_84, %c0_85] : memref<12x32x32xf32, #tpu.memory_space<vmem>>, vector<1x32x32xf32>
    %110 = vector.shape_cast %109 : vector<1x32x32xf32> to vector<32x32xf32>
    %c8 = arith.constant 8 : index
    %c0_86 = arith.constant 0 : index
    %c0_87 = arith.constant 0 : index
    %111 = vector.load %arg6[%c8, %c0_86, %c0_87] : memref<12x32x32xf32, #tpu.memory_space<vmem>>, vector<1x32x32xf32>
    %112 = vector.shape_cast %111 : vector<1x32x32xf32> to vector<32x32xf32>
    %c9 = arith.constant 9 : index
    %c0_88 = arith.constant 0 : index
    %c0_89 = arith.constant 0 : index
    %113 = vector.load %arg6[%c9, %c0_88, %c0_89] : memref<12x32x32xf32, #tpu.memory_space<vmem>>, vector<1x32x32xf32>
    %114 = vector.shape_cast %113 : vector<1x32x32xf32> to vector<32x32xf32>
    %c7_90 = arith.constant 7 : index
    %c0_91 = arith.constant 0 : index
    %c0_92 = arith.constant 0 : index
    %115 = vector.load %arg7[%c7_90, %c0_91, %c0_92] : memref<16x1x32xf32, #tpu.memory_space<vmem>>, vector<1x1x32xf32>
    %116 = vector.shape_cast %115 : vector<1x1x32xf32> to vector<1x32xf32>
    %c8_93 = arith.constant 8 : index
    %c0_94 = arith.constant 0 : index
    %c0_95 = arith.constant 0 : index
    %117 = vector.load %arg7[%c8_93, %c0_94, %c0_95] : memref<16x1x32xf32, #tpu.memory_space<vmem>>, vector<1x1x32xf32>
    %118 = vector.shape_cast %117 : vector<1x1x32xf32> to vector<1x32xf32>
    %c9_96 = arith.constant 9 : index
    %c0_97 = arith.constant 0 : index
    %c0_98 = arith.constant 0 : index
    %119 = vector.load %arg7[%c9_96, %c0_97, %c0_98] : memref<16x1x32xf32, #tpu.memory_space<vmem>>, vector<1x1x32xf32>
    %120 = vector.shape_cast %119 : vector<1x1x32xf32> to vector<1x32xf32>
    %c10 = arith.constant 10 : index
    %c0_99 = arith.constant 0 : index
    %c0_100 = arith.constant 0 : index
    %121 = vector.load %arg7[%c10, %c0_99, %c0_100] : memref<16x1x32xf32, #tpu.memory_space<vmem>>, vector<1x1x32xf32>
    %122 = vector.shape_cast %121 : vector<1x1x32xf32> to vector<1x32xf32>
    %c11 = arith.constant 11 : index
    %c0_101 = arith.constant 0 : index
    %c0_102 = arith.constant 0 : index
    %123 = vector.load %arg7[%c11, %c0_101, %c0_102] : memref<16x1x32xf32, #tpu.memory_space<vmem>>, vector<1x1x32xf32>
    %124 = vector.shape_cast %123 : vector<1x1x32xf32> to vector<1x32xf32>
    %c12 = arith.constant 12 : index
    %c0_103 = arith.constant 0 : index
    %c0_104 = arith.constant 0 : index
    %125 = vector.load %arg7[%c12, %c0_103, %c0_104] : memref<16x1x32xf32, #tpu.memory_space<vmem>>, vector<1x1x32xf32>
    %126 = vector.shape_cast %125 : vector<1x1x32xf32> to vector<1x32xf32>
    %cst_105 = arith.constant dense<0.000000e+00> : vector<16x32xf32>
    %127 = tpu.matmul %104, %106, %cst_105 {dimension_numbers = #tpu.dot_dimension_numbers<[1], [0], [0], [1], [0, 0, 1, 1], [], []>} : vector<16x32xf32>, vector<32x32xf32>, vector<16x32xf32> -> vector<16x32xf32>
    %cst_106 = arith.constant dense<0.000000e+00> : vector<16x32xf32>
    %128 = tpu.matmul %104, %108, %cst_106 {dimension_numbers = #tpu.dot_dimension_numbers<[1], [0], [0], [1], [0, 0, 1, 1], [], []>} : vector<16x32xf32>, vector<32x32xf32>, vector<16x32xf32> -> vector<16x32xf32>
    %cst_107 = arith.constant dense<0.000000e+00> : vector<48x32xf32>
    %129 = tpu.matmul %3, %127, %cst_107 {dimension_numbers = #tpu.dot_dimension_numbers<[1], [0], [0], [1], [0, 0, 1, 1], [], []>} : vector<48x16xf32>, vector<16x32xf32>, vector<48x32xf32> -> vector<48x32xf32>
    %cst_108 = arith.constant dense<0.000000e+00> : vector<48x32xf32>
    %130 = tpu.matmul %5, %128, %cst_108 {dimension_numbers = #tpu.dot_dimension_numbers<[1], [0], [0], [1], [0, 0, 1, 1], [], []>} : vector<48x16xf32>, vector<16x32xf32>, vector<48x32xf32> -> vector<48x32xf32>
    %131 = arith.addf %129, %130 : vector<48x32xf32>
    %132 = vector.broadcast %116 : vector<1x32xf32> to vector<48x32xf32>
    %133 = arith.addf %131, %132 : vector<48x32xf32>
    %cst_109 = arith.constant 0.000000e+00 : f32
    %134 = vector.broadcast %cst_109 : f32 to vector<48x32xf32>
    %135 = arith.maximumf %133, %134 : vector<48x32xf32>
    %cst_110 = arith.constant dense<0.000000e+00> : vector<48x32xf32>
    %136 = tpu.matmul %135, %110, %cst_110 {dimension_numbers = #tpu.dot_dimension_numbers<[1], [0], [0], [1], [0, 0, 1, 1], [], []>} : vector<48x32xf32>, vector<32x32xf32>, vector<48x32xf32> -> vector<48x32xf32>
    %137 = vector.broadcast %118 : vector<1x32xf32> to vector<48x32xf32>
    %138 = arith.addf %136, %137 : vector<48x32xf32>
    %cst_111 = arith.constant 0.000000e+00 : f32
    %139 = vector.broadcast %cst_111 : f32 to vector<48x32xf32>
    %140 = arith.maximumf %138, %139 : vector<48x32xf32>
    %cst_112 = arith.constant dense<0.000000e+00> : vector<48x32xf32>
    %141 = tpu.matmul %140, %112, %cst_112 {dimension_numbers = #tpu.dot_dimension_numbers<[1], [0], [0], [1], [0, 0, 1, 1], [], []>} : vector<48x32xf32>, vector<32x32xf32>, vector<48x32xf32> -> vector<48x32xf32>
    %142 = vector.broadcast %120 : vector<1x32xf32> to vector<48x32xf32>
    %143 = arith.addf %141, %142 : vector<48x32xf32>
    %cst_113 = arith.constant 0.000000e+00 : f32
    %144 = vector.broadcast %cst_113 : f32 to vector<48x32xf32>
    %145 = arith.maximumf %143, %144 : vector<48x32xf32>
    %146 = vector.broadcast %122 : vector<1x32xf32> to vector<48x32xf32>
    %147 = arith.mulf %145, %146 : vector<48x32xf32>
    %148 = vector.broadcast %124 : vector<1x32xf32> to vector<48x32xf32>
    %149 = arith.addf %147, %148 : vector<48x32xf32>
    %cst_114 = arith.constant dense<0.000000e+00> : vector<16x32xf32>
    %150 = tpu.matmul %6, %149, %cst_114 {dimension_numbers = #tpu.dot_dimension_numbers<[1], [0], [0], [1], [0, 0, 1, 1], [], []>} : vector<16x48xf32>, vector<48x32xf32>, vector<16x32xf32> -> vector<16x32xf32>
    %cst_115 = arith.constant dense<0.000000e+00> : vector<16x32xf32>
    %151 = tpu.matmul %104, %114, %cst_115 {dimension_numbers = #tpu.dot_dimension_numbers<[1], [0], [0], [1], [0, 0, 1, 1], [], []>} : vector<16x32xf32>, vector<32x32xf32>, vector<16x32xf32> -> vector<16x32xf32>
    %152 = vector.broadcast %126 : vector<1x32xf32> to vector<16x32xf32>
    %153 = arith.addf %151, %152 : vector<16x32xf32>
    %cst_116 = arith.constant 0.000000e+00 : f32
    %154 = vector.broadcast %cst_116 : f32 to vector<16x32xf32>
    %155 = arith.maximumf %153, %154 : vector<16x32xf32>
    %156 = arith.addf %150, %155 : vector<16x32xf32>
    %157 = arith.addf %52, %104 : vector<16x32xf32>
    %158 = arith.addf %157, %156 : vector<16x32xf32>
    %cst_117 = arith.constant dense<0.000000e+00> : vector<32xf32>
    %159 = vector.multi_reduction <add>, %158, %cst_117 [0] : vector<16x32xf32> to vector<32xf32>
    %160 = vector.shape_cast %159 : vector<32xf32> to vector<1x32xf32>
    %cst_118 = arith.constant 1.600000e+01 : f32
    %161 = vector.broadcast %cst_118 : f32 to vector<1x32xf32>
    %162 = arith.divf %160, %161 : vector<1x32xf32>
    %c10_119 = arith.constant 10 : index
    %c0_120 = arith.constant 0 : index
    %c0_121 = arith.constant 0 : index
    %163 = vector.load %arg6[%c10_119, %c0_120, %c0_121] : memref<12x32x32xf32, #tpu.memory_space<vmem>>, vector<1x32x32xf32>
    %164 = vector.shape_cast %163 : vector<1x32x32xf32> to vector<32x32xf32>
    %cst_122 = arith.constant dense<0.000000e+00> : vector<1x32xf32>
    %165 = tpu.matmul %162, %164, %cst_122 {dimension_numbers = #tpu.dot_dimension_numbers<[1], [0], [0], [1], [0, 0, 1, 1], [], []>} : vector<1x32xf32>, vector<32x32xf32>, vector<1x32xf32> -> vector<1x32xf32>
    %c13 = arith.constant 13 : index
    %c0_123 = arith.constant 0 : index
    %c0_124 = arith.constant 0 : index
    %166 = vector.load %arg7[%c13, %c0_123, %c0_124] : memref<16x1x32xf32, #tpu.memory_space<vmem>>, vector<1x1x32xf32>
    %167 = vector.shape_cast %166 : vector<1x1x32xf32> to vector<1x32xf32>
    %168 = arith.addf %165, %167 : vector<1x32xf32>
    %cst_125 = arith.constant 0.000000e+00 : f32
    %169 = vector.broadcast %cst_125 : f32 to vector<1x32xf32>
    %170 = arith.cmpf ogt, %168, %169 : vector<1x32xf32>
    %cst_126 = arith.constant 0.000000e+00 : f32
    %171 = vector.broadcast %cst_126 : f32 to vector<1x32xf32>
    %172 = arith.minimumf %168, %171 : vector<1x32xf32>
    %173 = math.exp %172 : vector<1x32xf32>
    %cst_127 = arith.constant 1.000000e+00 : f32
    %174 = vector.broadcast %cst_127 : f32 to vector<1x32xf32>
    %175 = arith.subf %173, %174 : vector<1x32xf32>
    %cst_128 = arith.constant 1.67326319 : f32
    %176 = vector.broadcast %cst_128 : f32 to vector<1x32xf32>
    %177 = arith.mulf %176, %175 : vector<1x32xf32>
    %178 = arith.select %170, %168, %177 : vector<1x32xi1>, vector<1x32xf32>
    %cst_129 = arith.constant 1.05070102 : f32
    %179 = vector.broadcast %cst_129 : f32 to vector<1x32xf32>
    %180 = arith.mulf %179, %178 : vector<1x32xf32>
    %c11_130 = arith.constant 11 : index
    %c0_131 = arith.constant 0 : index
    %c0_132 = arith.constant 0 : index
    %181 = vector.load %arg6[%c11_130, %c0_131, %c0_132] : memref<12x32x32xf32, #tpu.memory_space<vmem>>, vector<1x32x32xf32>
    %182 = vector.shape_cast %181 : vector<1x32x32xf32> to vector<32x32xf32>
    %cst_133 = arith.constant dense<0.000000e+00> : vector<1x32xf32>
    %183 = tpu.matmul %180, %182, %cst_133 {dimension_numbers = #tpu.dot_dimension_numbers<[1], [0], [0], [1], [0, 0, 1, 1], [], []>} : vector<1x32xf32>, vector<32x32xf32>, vector<1x32xf32> -> vector<1x32xf32>
    %c14 = arith.constant 14 : index
    %c0_134 = arith.constant 0 : index
    %c0_135 = arith.constant 0 : index
    %184 = vector.load %arg7[%c14, %c0_134, %c0_135] : memref<16x1x32xf32, #tpu.memory_space<vmem>>, vector<1x1x32xf32>
    %185 = vector.shape_cast %184 : vector<1x1x32xf32> to vector<1x32xf32>
    %186 = arith.addf %183, %185 : vector<1x32xf32>
    %cst_136 = arith.constant 0.000000e+00 : f32
    %187 = vector.broadcast %cst_136 : f32 to vector<1x32xf32>
    %188 = arith.cmpf ogt, %186, %187 : vector<1x32xf32>
    %cst_137 = arith.constant 0.000000e+00 : f32
    %189 = vector.broadcast %cst_137 : f32 to vector<1x32xf32>
    %190 = arith.minimumf %186, %189 : vector<1x32xf32>
    %191 = math.exp %190 : vector<1x32xf32>
    %cst_138 = arith.constant 1.000000e+00 : f32
    %192 = vector.broadcast %cst_138 : f32 to vector<1x32xf32>
    %193 = arith.subf %191, %192 : vector<1x32xf32>
    %cst_139 = arith.constant 1.67326319 : f32
    %194 = vector.broadcast %cst_139 : f32 to vector<1x32xf32>
    %195 = arith.mulf %194, %193 : vector<1x32xf32>
    %196 = arith.select %188, %186, %195 : vector<1x32xi1>, vector<1x32xf32>
    %cst_140 = arith.constant 1.05070102 : f32
    %197 = vector.broadcast %cst_140 : f32 to vector<1x32xf32>
    %198 = arith.mulf %197, %196 : vector<1x32xf32>
    %c0_141 = arith.constant 0 : index
    %c0_142 = arith.constant 0 : index
    %199 = vector.load %arg8[%c0_141, %c0_142] : memref<32x128xf32, #tpu.memory_space<vmem>>, vector<32x128xf32>
    %cst_143 = arith.constant dense<0.000000e+00> : vector<1x128xf32>
    %200 = tpu.matmul %198, %199, %cst_143 {dimension_numbers = #tpu.dot_dimension_numbers<[1], [0], [0], [1], [0, 0, 1, 1], [], []>} : vector<1x32xf32>, vector<32x128xf32>, vector<1x128xf32> -> vector<1x128xf32>
    %c0_144 = arith.constant 0 : index
    %c0_145 = arith.constant 0 : index
    %201 = vector.load %arg9[%c0_144, %c0_145] : memref<1x128xf32, #tpu.memory_space<vmem>>, vector<1x128xf32>
    %202 = arith.addf %200, %201 : vector<1x128xf32>
    %cst_146 = arith.constant dense<0xFF800000> : vector<1xf32>
    %203 = vector.multi_reduction <maximumf>, %202, %cst_146 [1] : vector<1x128xf32> to vector<1xf32>
    %204 = vector.shape_cast %203 : vector<1xf32> to vector<1x1xf32>
    %205 = vector.broadcast %204 : vector<1x1xf32> to vector<1x128xf32>
    %206 = arith.subf %202, %205 : vector<1x128xf32>
    %207 = math.exp %206 : vector<1x128xf32>
    %cst_147 = arith.constant dense<0.000000e+00> : vector<1xf32>
    %208 = vector.multi_reduction <add>, %207, %cst_147 [1] : vector<1x128xf32> to vector<1xf32>
    %209 = vector.shape_cast %208 : vector<1xf32> to vector<1x1xf32>
    %210 = math.log %209 : vector<1x1xf32>
    %211 = vector.broadcast %210 : vector<1x1xf32> to vector<1x128xf32>
    %212 = arith.subf %206, %211 : vector<1x128xf32>
    %c0_148 = arith.constant 0 : index
    %c0_149 = arith.constant 0 : index
    %213 = vector.load %arg10[%c0_148, %c0_149] : memref<1x128xf32, #tpu.memory_space<vmem>>, vector<1x128xf32>
    tpu.vector_store %arg10[%c0_148, %c0_149], %212 {strides = array<i32>} : memref<1x128xf32, #tpu.memory_space<vmem>>, vector<1x128xf32>,
    return
  }
}

</mosaic_0001>

<llo_original>
// kernel: fwd.1
$region0: #{fwd.1}
  #allocation0 [shape = 'u32[]', space=smem, size = 0x4, offset = 0x4, fixed_abs, tag = 'smem constant byte address 0x4 - core index']
  #allocation1 [shape = 'u32[144,128]{1,0:T(1,128)}', space=vmem, size = 0x12000, scoped, tag = 'internal scratch']
  %s0 = inlined_call_operand.vmem [shape: f32[16,8], index: 0, kind: input, shape index: {}]
  %s1 = inlined_call_operand.vmem [shape: f32[16,16], index: 1, kind: input, shape index: {}]
  %s2 = inlined_call_operand.vmem [shape: f32[2,48,16], index: 2, kind: input, shape index: {}]
  %s3 = inlined_call_operand.vmem [shape: f32[16,48], index: 3, kind: input, shape index: {}]
  %s4 = inlined_call_operand.vmem [shape: f32[3,1,8], index: 4, kind: input, shape index: {}]
  %s5 = inlined_call_operand.vmem [shape: f32[2,8,32], index: 5, kind: input, shape index: {}]
  %s6 = inlined_call_operand.hbm [shape: f32[12,32,32], index: 6, kind: input, shape index: {}]
  %s7 = inlined_call_operand.vmem [shape: f32[16,1,32], index: 7, kind: input, shape index: {}]
  %s8 = inlined_call_operand.vmem [shape: f32[32,128], index: 8, kind: input, shape index: {}]
  %s9 = inlined_call_operand.vmem [shape: f32[1,128], index: 9, kind: input, shape index: {}]
  %s10 = inlined_call_operand.hbm [shape: f32[1,128], index: 10, kind: output, shape index: {}]
  %s11 = sld [smem:[#allocation0]]
  $region54: #{fwd.1} parent=0
    _
  %s13 = ssub.s32 1, %s11
  %s14 = scalar_select 0, %s13, %s11
  $region1: #{fwd.1} parent=0
    #allocation2 [shape = 'u8[196608]{0}', space=vmem, size = 0x30000, scoped, tag = 'input window, operand 6, single buffered']
    #allocation3 [shape = 's32[1]{0}', space=sflag, size = 0x4, scoped, tag = 'scoped memory for fwd.1']
    #allocation4 [shape = 's32[1]{0}', space=sflag, size = 0x4, scoped, tag = 'scoped memory for fwd.1']
    #allocation5 [shape = 'u8[512]{0}', space=vmem, size = 0x400, scoped, tag = 'output window, operand 0, single buffered']
    %15 = vsyncpa [#allocation3], 0
    %16 = vsyncpa [#allocation4], 0
    // Predicated region
    $region2: #{fwd.1} parent=1 // pred_check
      _
    $region3: #{fwd.1} parent=1 // pred_check_branch
      %18 = sbr.rel (0) target = $region5
    $region4: #{fwd.1} parent=1 // pred_region
      _
    $region5: #{fwd.1} parent=1 // pred_fallthru
      _
    // Predicated region
    $region6: #{fwd.1} parent=1 // pred_check
      _
    $region7: #{fwd.1} parent=1 // pred_check_branch
      %20 = sbr.rel (0) target = $region9
    $region8: #{fwd.1} parent=1 // pred_region
      _
    $region9: #{fwd.1} parent=1 // pred_fallthru
      _
    // Predicated region
    $region10: #{fwd.1} parent=1 // pred_check
      _
    $region11: #{fwd.1} parent=1 // pred_check_branch
      %22 = sbr.rel (0) target = $region13
    $region12: #{fwd.1} parent=1 // pred_region
      _
    $region13: #{fwd.1} parent=1 // pred_fallthru
      _
    // Predicated region
    $region14: #{fwd.1} parent=1 // pred_check
      _
    $region15: #{fwd.1} parent=1 // pred_check_branch
      %24 = sbr.rel (0) target = $region17
    $region16: #{fwd.1} parent=1 // pred_region
      _
    $region17: #{fwd.1} parent=1 // pred_fallthru
      _
    // Predicated region
    $region18: #{fwd.1} parent=1 // pred_check
      _
    $region19: #{fwd.1} parent=1 // pred_check_branch
      %26 = sbr.rel (0) target = $region21
    $region20: #{fwd.1} parent=1 // pred_region
      _
    $region21: #{fwd.1} parent=1 // pred_fallthru
      _
    // Predicated region
    $region22: #{fwd.1} parent=1 // pred_check
      _
    $region23: #{fwd.1} parent=1 // pred_check_branch
      %28 = sbr.rel (0) target = $region25
    $region24: #{fwd.1} parent=1 // pred_region
      _
    $region25: #{fwd.1} parent=1 // pred_fallthru
      _
    // Predicated region
    $region26: #{fwd.1} parent=1 // pred_check
      _
    $region27: #{fwd.1} parent=1 // pred_check_branch
      %30 = sbr.rel (0) target = $region29
    $region28: #{fwd.1} parent=1 // pred_region
      %s32 = ssub.s32 6144, 6144
      %33 = vsyncadd [#allocation3], %s32
      %s34 = sshll.u32 [#allocation2], 4
      %s35 = int_to_ptr.vmem [resolvable:$true] %s34
      %40 = dma.hbm_to_vmem [thread:$0]  %s6, 6144, %s35, [#allocation3], 128, 128, 8
    $region29: #{fwd.1} parent=1 // pred_fallthru
      _
    // Predicated region
    $region30: #{fwd.1} parent=1 // pred_check
      _
    $region31: #{fwd.1} parent=1 // pred_check_branch
      %42 = sbr.rel (0) target = $region33
    $region32: #{fwd.1} parent=1 // pred_region
      _
    $region33: #{fwd.1} parent=1 // pred_fallthru
      _
    // Predicated region
    $region34: #{fwd.1} parent=1 // pred_check
      _
    $region35: #{fwd.1} parent=1 // pred_check_branch
      %44 = sbr.rel (0) target = $region37
    $region36: #{fwd.1} parent=1 // pred_region
      _
    $region37: #{fwd.1} parent=1 // pred_fallthru
      _
    // Predicated region
    $region38: #{fwd.1} parent=1 // pred_check
      _
    $region39: #{fwd.1} parent=1 // pred_check_branch
      %46 = sbr.rel (0) target = $region41
    $region40: #{fwd.1} parent=1 // pred_region
      _
    $region41: #{fwd.1} parent=1 // pred_fallthru
      _
    // Predicated region
    $region42: #{fwd.1} parent=1 // pred_check
      _
    $region43: #{fwd.1} parent=1 // pred_check_branch
      %48 = sbr.rel (0) target = $region45
    $region44: #{fwd.1} parent=1 // pred_region
      %49 = dma.done [#allocation3], 6144
    $region45: #{fwd.1} parent=1 // pred_fallthru
      _
    %v50 = vld [vmem:[%s0] sm:$0xff]
    %v51 = vld [vmem:[%s0 + $0x8] sm:$0xff]
    %v52 = vld [vmem:[%s1] sm:$0xff]
    %v53 = vld [vmem:[%s1 + $0x8] sm:$0xff]
    %v54 = vld [vmem:[%s2] sm:$0xff]
    %v55 = vld [vmem:[%s2 + $0x8] sm:$0xff]
    %v56 = vld [vmem:[%s2 + $0x10] sm:$0xff]
    %v57 = vld [vmem:[%s2 + $0x18] sm:$0xff]
    %v58 = vld [vmem:[%s2 + $0x20] sm:$0xff]
    %v59 = vld [vmem:[%s2 + $0x28] sm:$0xff]
    %s60 = scalar_lea.vmem %s2, 48
    %v61 = vld [vmem:[%s60] sm:$0xff]
    %v62 = vld [vmem:[%s60 + $0x8] sm:$0xff]
    %v63 = vld [vmem:[%s60 + $0x10] sm:$0xff]
    %v64 = vld [vmem:[%s60 + $0x18] sm:$0xff]
    %v65 = vld [vmem:[%s60 + $0x20] sm:$0xff]
    %v66 = vld [vmem:[%s60 + $0x28] sm:$0xff]
    %v67 = vld [vmem:[%s3] sm:$0xff]
    %v68 = vld [vmem:[%s3 + $0x8] sm:$0xff]
    %v69 = vld [vmem:[%s4] sm:$0x1]
    %s70 = scalar_lea.vmem %s4, 1
    %v71 = vld [vmem:[%s70] sm:$0x1]
    %s72 = scalar_lea.vmem %s4, 2
    %v73 = vld [vmem:[%s72] sm:$0x1]
    %vm74 = vcmask 64512
    %v75 = vsel %vm74, %v50, 0.0
    %v76 = vsel %vm74, %v51, 0.0
    %v77 = vadd.f32 %v75, %v76
    %v78 = vrot.slane %v77, 4
    %v79 = vadd.f32 %v77, %v78
    %v80 = vrot.slane %v79, 2
    %v81 = vadd.f32 %v79, %v80
    %v82 = vrot.slane %v81, 1
    %v83 = vadd.f32 %v81, %v82
    %v84 = vrcp.pop 16.0
    %v85 = vmul.f32 %v83, %v84
    %v86 = vmul.f32 %v85, %v73
    %v87 = vlaneseq
    %v88 = vshrl.u32 %v87, 7
    %v89 = vsub.s32 0, %v88
    %v90 = vrot.slane %v86, %v89
    %v91 = vsub.f32 %v50, %v90
    %v92 = vsub.f32 %v51, %v90
    %v93 = vmul.f32 %v91, %v91
    %v94 = vmul.f32 %v92, %v92
    %v95 = vsel %vm74, %v93, 0.0
    %v96 = vsel %vm74, %v94, 0.0
    %v97 = vadd.f32 %v95, %v96
    %v98 = vrot.slane %v97, 4
    %v99 = vadd.f32 %v97, %v98
    %v100 = vrot.slane %v99, 2
    %v101 = vadd.f32 %v99, %v100
    %v102 = vrot.slane %v101, 1
    %v103 = vadd.f32 %v101, %v102
    %v104 = vmul.f32 %v103, %v84
    %v105 = vadd.f32 %v104, 1e-05
    %v106 = vrsqrt.pop %v105
    %v107 = vmul.f32 %v69, %v106
    %v109 = vlaneseq
    %v110 = vshrl.u32 %v109, 7
    %v111 = vsub.s32 0, %v110
    %v112 = vrot.slane %v107, %v111
    %v114 = vmul.f32 %v91, %v112
    %v115 = vmul.f32 %v92, %v112
    %v117 = vlaneseq
    %v118 = vshrl.u32 %v117, 7
    %v119 = vsub.s32 0, %v118
    %v120 = vrot.slane %v71, %v119
    %v122 = vadd.f32 %v114, %v120
    %v123 = vadd.f32 %v115, %v120
    %vm124 = vcmask 130048
    %v126 = vsel %vm124, %v52, 0
    %v129 = vsel %vm124, %v53, 0
    %131 = vmatprep.subr.mxu0 0.0
    %132 = vmatpush1.msra.mxu0 %v122
    %133 = vmatprep.subr.mxu0 0.0
    %134 = vmatpush1.msra.mxu0 %v123
    %135 = vmatprep.subr.mxu0 0.0
    %136 = vmatpush1.msra.mxu0 0.0
    %137 = vmatprep.subr.mxu0 0.0
    %138 = vmatpush1.msra.mxu0 0.0
    %139 = vmatprep.subr.mxu0 0.0
    %140 = vmatpush1.msra.mxu0 0.0
    %141 = vmatprep.subr.mxu0 0.0
    %142 = vmatpush1.msra.mxu0 0.0
    %143 = vmatprep.subr.mxu0 0.0
    %144 = vmatpush1.msra.mxu0 0.0
    %145 = vmatprep.subr.mxu0 0.0
    %146 = vmatpush1.msra.mxu0 0.0
    %147 = vmatprep.subr.mxu0 0.0
    %148 = vmatpush1.msra.mxu0 0.0
    %149 = vmatprep.subr.mxu0 0.0
    %150 = vmatpush1.msra.mxu0 0.0
    %151 = vmatprep.subr.mxu0 0.0
    %152 = vmatpush1.msra.mxu0 0.0
    %153 = vmatprep.subr.mxu0 0.0
    %154 = vmatpush1.msra.mxu0 0.0
    %155 = vmatprep.subr.mxu0 0.0
    %156 = vmatpush1.msra.mxu0 0.0
    %157 = vmatprep.subr.mxu0 0.0
    %158 = vmatpush1.msra.mxu0 0.0
    %159 = vmatprep.subr.mxu0 0.0
    %160 = vmatpush1.msra.mxu0 0.0
    %161 = vmatprep.subr.mxu0 0.0
    %162 = vmatpush1.msra.mxu0 0.0
    %163 = vmatprep.subr.mxu0 0.0
    %164 = vmatpush1.msra.mxu0 0.0
    %165 = vmatprep.subr.mxu0 0.0
    %166 = vmatpush1.msra.mxu0 0.0
    %167 = vmatprep.subr.mxu0 0.0
    %168 = vmatpush1.msra.mxu0 0.0
    %169 = vmatprep.subr.mxu0 0.0
    %170 = vmatpush1.msra.mxu0 0.0
    %171 = vmatprep.subr.mxu0 0.0
    %172 = vmatpush1.msra.mxu0 0.0
    %173 = vmatprep.subr.mxu0 0.0
    %174 = vmatpush1.msra.mxu0 0.0
    %175 = vmatprep.subr.mxu0 0.0
    %176 = vmatpush1.msra.mxu0 0.0
    %177 = vmatprep.subr.mxu0 0.0
    %178 = vmatpush1.msra.mxu0 0.0
    %179 = vmatprep.subr.mxu0 0.0
    %180 = vmatpush1.msra.mxu0 0.0
    %181 = vmatprep.subr.mxu0 0.0
    %182 = vmatpush1.msra.mxu0 0.0
    %183 = vmatprep.subr.mxu0 0.0
    %184 = vmatpush1.msra.mxu0 0.0
    %185 = vmatprep.subr.mxu0 0.0
    %186 = vmatpush1.msra.mxu0 0.0
    %187 = vmatprep.subr.mxu0 0.0
    %188 = vmatpush1.msra.mxu0 0.0
    %189 = vmatprep.subr.mxu0 0.0
    %190 = vmatpush1.msra.mxu0 0.0
    %191 = vmatprep.subr.mxu0 0.0
    %192 = vmatpush1.msra.mxu0 0.0
    %193 = vmatprep.subr.mxu0 0.0
    %194 = vmatpush1.msra.mxu0 0.0
    %195 = vmatprep.mubr.f32.mxu0 0.0
    %196 = vmatmul.mubr.f32.gmra.mrb[0].mxu0 %v126
    %v197 = vpop.f32.mrb[0].mxu0
    %v198 = vadd.f32 0.0, %v197
    %v199 = vpop.f32.mrb[0].mxu0
    %200 = vmatprep.mubr.f32.mxu0 0.0
    %201 = vmatmul.mubr.f32.gmra.mrb[0].mxu0 %v129
    %v202 = vpop.f32.mrb[0].mxu0
    %v203 = vadd.f32 0.0, %v202
    %v204 = vpop.f32.mrb[0].mxu0
    %205 = vdwg.mxu0
    %v206 = vld [vmem:[%s5] sm:$0xff]
    %v207 = vld [vmem:[%s7] sm:$0x1]
    %v209 = vlaneseq
    %v210 = vshrl.u32 %v209, 7
    %v211 = vsub.s32 0, %v210
    %v212 = vrot.slane %v207, %v211
    %v215 = vsel %vm74, %v198, 0
    %v218 = vsel %vm74, %v203, 0
    %220 = vmatprep.subr.mxu0 0.0
    %221 = vmatpush1.msra.mxu0 %v206
    %222 = vmatprep.subr.mxu0 0.0
    %223 = vmatpush1.msra.mxu0 0.0
    %224 = vmatprep.subr.mxu0 0.0
    %225 = vmatpush1.msra.mxu0 0.0
    %226 = vmatprep.subr.mxu0 0.0
    %227 = vmatpush1.msra.mxu0 0.0
    %228 = vmatprep.subr.mxu0 0.0
    %229 = vmatpush1.msra.mxu0 0.0
    %230 = vmatprep.subr.mxu0 0.0
    %231 = vmatpush1.msra.mxu0 0.0
    %232 = vmatprep.subr.mxu0 0.0
    %233 = vmatpush1.msra.mxu0 0.0
    %234 = vmatprep.subr.mxu0 0.0
    %235 = vmatpush1.msra.mxu0 0.0
    %236 = vmatprep.subr.mxu0 0.0
    %237 = vmatpush1.msra.mxu0 0.0
    %238 = vmatprep.subr.mxu0 0.0
    %239 = vmatpush1.msra.mxu0 0.0
    %240 = vmatprep.subr.mxu0 0.0
    %241 = vmatpush1.msra.mxu0 0.0
    %242 = vmatprep.subr.mxu0 0.0
    %243 = vmatpush1.msra.mxu0 0.0
    %244 = vmatprep.subr.mxu0 0.0
    %245 = vmatpush1.msra.mxu0 0.0
    %246 = vmatprep.subr.mxu0 0.0
    %247 = vmatpush1.msra.mxu0 0.0
    %248 = vmatprep.subr.mxu0 0.0
    %249 = vmatpush1.msra.mxu0 0.0
    %250 = vmatprep.subr.mxu0 0.0
    %251 = vmatpush1.msra.mxu0 0.0
    %252 = vmatprep.subr.mxu0 0.0
    %253 = vmatpush1.msra.mxu0 0.0
    %254 = vmatprep.subr.mxu0 0.0
    %255 = vmatpush1.msra.mxu0 0.0
    %256 = vmatprep.subr.mxu0 0.0
    %257 = vmatpush1.msra.mxu0 0.0
    %258 = vmatprep.subr.mxu0 0.0
    %259 = vmatpush1.msra.mxu0 0.0
    %260 = vmatprep.subr.mxu0 0.0
    %261 = vmatpush1.msra.mxu0 0.0
    %262 = vmatprep.subr.mxu0 0.0
    %263 = vmatpush1.msra.mxu0 0.0
    %264 = vmatprep.subr.mxu0 0.0
    %265 = vmatpush1.msra.mxu0 0.0
    %266 = vmatprep.subr.mxu0 0.0
    %267 = vmatpush1.msra.mxu0 0.0
    %268 = vmatprep.subr.mxu0 0.0
    %269 = vmatpush1.msra.mxu0 0.0
    %270 = vmatprep.subr.mxu0 0.0
    %271 = vmatpush1.msra.mxu0 0.0
    %272 = vmatprep.subr.mxu0 0.0
    %273 = vmatpush1.msra.mxu0 0.0
    %274 = vmatprep.subr.mxu0 0.0
    %275 = vmatpush1.msra.mxu0 0.0
    %276 = vmatprep.subr.mxu0 0.0
    %277 = vmatpush1.msra.mxu0 0.0
    %278 = vmatprep.subr.mxu0 0.0
    %279 = vmatpush1.msra.mxu0 0.0
    %280 = vmatprep.subr.mxu0 0.0
    %281 = vmatpush1.msra.mxu0 0.0
    %282 = vmatprep.subr.mxu0 0.0
    %283 = vmatpush1.msra.mxu0 0.0
    %284 = vmatprep.mubr.f32.mxu0 0.0
    %285 = vmatmul.mubr.f32.gmra.mrb[0].mxu0 %v215
    %v286 = vpop.f32.mrb[0].mxu0
    %v287 = vadd.f32 %v212, %v286
    %v288 = vpop.f32.mrb[0].mxu0
    %289 = vmatprep.mubr.f32.mxu0 0.0
    %290 = vmatmul.mubr.f32.gmra.mrb[0].mxu0 %v218
    %v291 = vpop.f32.mrb[0].mxu0
    %v292 = vadd.f32 %v212, %v291
    %v293 = vpop.f32.mrb[0].mxu0
    %294 = vdwg.mxu0
    %s295 = scalar_lea.vmem %s5, 8
    %v296 = vld [vmem:[%s295] sm:$0xff]
    %v298 = vsel %vm74, %v122, 0
    %v301 = vsel %vm74, %v123, 0
    %303 = vmatprep.subr.mxu0 0.0
    %304 = vmatpush1.msra.mxu0 %v296
    %305 = vmatprep.subr.mxu0 0.0
    %306 = vmatpush1.msra.mxu0 0.0
    %307 = vmatprep.subr.mxu0 0.0
    %308 = vmatpush1.msra.mxu0 0.0
    %309 = vmatprep.subr.mxu0 0.0
    %310 = vmatpush1.msra.mxu0 0.0
    %311 = vmatprep.subr.mxu0 0.0
    %312 = vmatpush1.msra.mxu0 0.0
    %313 = vmatprep.subr.mxu0 0.0
    %314 = vmatpush1.msra.mxu0 0.0
    %315 = vmatprep.subr.mxu0 0.0
    %316 = vmatpush1.msra.mxu0 0.0
    %317 = vmatprep.subr.mxu0 0.0
    %318 = vmatpush1.msra.mxu0 0.0
    %319 = vmatprep.subr.mxu0 0.0
    %320 = vmatpush1.msra.mxu0 0.0
    %321 = vmatprep.subr.mxu0 0.0
    %322 = vmatpush1.msra.mxu0 0.0
    %323 = vmatprep.subr.mxu0 0.0
    %324 = vmatpush1.msra.mxu0 0.0
    %325 = vmatprep.subr.mxu0 0.0
    %326 = vmatpush1.msra.mxu0 0.0
    %327 = vmatprep.subr.mxu0 0.0
    %328 = vmatpush1.msra.mxu0 0.0
    %329 = vmatprep.subr.mxu0 0.0
    %330 = vmatpush1.msra.mxu0 0.0
    %331 = vmatprep.subr.mxu0 0.0
    %332 = vmatpush1.msra.mxu0 0.0
    %333 = vmatprep.subr.mxu0 0.0
    %334 = vmatpush1.msra.mxu0 0.0
    %335 = vmatprep.subr.mxu0 0.0
    %336 = vmatpush1.msra.mxu0 0.0
    %337 = vmatprep.subr.mxu0 0.0
    %338 = vmatpush1.msra.mxu0 0.0
    %339 = vmatprep.subr.mxu0 0.0
    %340 = vmatpush1.msra.mxu0 0.0
    %341 = vmatprep.subr.mxu0 0.0
    %342 = vmatpush1.msra.mxu0 0.0
    %343 = vmatprep.subr.mxu0 0.0
    %344 = vmatpush1.msra.mxu0 0.0
    %345 = vmatprep.subr.mxu0 0.0
    %346 = vmatpush1.msra.mxu0 0.0
    %347 = vmatprep.subr.mxu0 0.0
    %348 = vmatpush1.msra.mxu0 0.0
    %349 = vmatprep.subr.mxu0 0.0
    %350 = vmatpush1.msra.mxu0 0.0
    %351 = vmatprep.subr.mxu0 0.0
    %352 = vmatpush1.msra.mxu0 0.0
    %353 = vmatprep.subr.mxu0 0.0
    %354 = vmatpush1.msra.mxu0 0.0
    %355 = vmatprep.subr.mxu0 0.0
    %356 = vmatpush1.msra.mxu0 0.0
    %357 = vmatprep.subr.mxu0 0.0
    %358 = vmatpush1.msra.mxu0 0.0
    %359 = vmatprep.subr.mxu0 0.0
    %360 = vmatpush1.msra.mxu0 0.0
    %361 = vmatprep.subr.mxu0 0.0
    %362 = vmatpush1.msra.mxu0 0.0
    %363 = vmatprep.subr.mxu0 0.0
    %364 = vmatpush1.msra.mxu0 0.0
    %365 = vmatprep.subr.mxu0 0.0
    %366 = vmatpush1.msra.mxu0 0.0
    %367 = vmatprep.mubr.f32.mxu0 0.0
    %368 = vmatmul.mubr.f32.gmra.mrb[0].mxu0 %v298
    %v369 = vpop.f32.mrb[0].mxu0
    %v370 = vadd.f32 0.0, %v369
    %v371 = vpop.f32.mrb[0].mxu0
    %372 = vmatprep.mubr.f32.mxu0 0.0
    %373 = vmatmul.mubr.f32.gmra.mrb[0].mxu0 %v301
    %v374 = vpop.f32.mrb[0].mxu0
    %v375 = vadd.f32 0.0, %v374
    %v376 = vpop.f32.mrb[0].mxu0
    %377 = vdwg.mxu0
    %v378 = vadd.f32 %v287, %v370
    %v379 = vadd.f32 %v292, %v375
    %vm380 = vcmp.gt.f32.partialorder %v378, 0.0
    %vm381 = vcmp.gt.f32.partialorder %v379, 0.0
    %v382 = vmin.f32 %v378, 0.0
    %v383 = vmin.f32 %v379, 0.0
    %v384 = vmul.f32 %v382, 1.442695
    %v385 = vpow.pop %v384
    %v386 = vmul.f32 %v383, 1.442695
    %v387 = vpow.pop %v386
    %v388 = vsub.f32 %v385, 1.0
    %v389 = vsub.f32 %v387, 1.0
    %v390 = vsel %vm380, %v378, %v388
    %v391 = vsel %vm381, %v379, %v389
    %v392 = vld [vmem:[#allocation2] sm:$0xff]
    %v393 = vld [vmem:[#allocation2 + $0x8] sm:$0xff]
    %v394 = vld [vmem:[#allocation2 + $0x10] sm:$0xff]
    %v395 = vld [vmem:[#allocation2 + $0x18] sm:$0xff]
    %s396 = scalar_lea.vmem [#allocation2], 32
    %v397 = vld [vmem:[%s396] sm:$0xff]
    %v398 = vld [vmem:[%s396 + $0x8] sm:$0xff]
    %v399 = vld [vmem:[%s396 + $0x10] sm:$0xff]
    %v400 = vld [vmem:[%s396 + $0x18] sm:$0xff]
    %s401 = scalar_lea.vmem [#allocation2], 64
    %v402 = vld [vmem:[%s401] sm:$0xff]
    %v403 = vld [vmem:[%s401 + $0x8] sm:$0xff]
    %v404 = vld [vmem:[%s401 + $0x10] sm:$0xff]
    %v405 = vld [vmem:[%s401 + $0x18] sm:$0xff]
    %s406 = scalar_lea.vmem [#allocation2], 96
    %v407 = vld [vmem:[%s406] sm:$0xff]
    %v408 = vld [vmem:[%s406 + $0x8] sm:$0xff]
    %v409 = vld [vmem:[%s406 + $0x10] sm:$0xff]
    %v410 = vld [vmem:[%s406 + $0x18] sm:$0xff]
    %s411 = scalar_lea.vmem [#allocation2], 128
    %v412 = vld [vmem:[%s411] sm:$0xff]
    %v413 = vld [vmem:[%s411 + $0x8] sm:$0xff]
    %v414 = vld [vmem:[%s411 + $0x10] sm:$0xff]
    %v415 = vld [vmem:[%s411 + $0x18] sm:$0xff]
    %s416 = scalar_lea.vmem %s7, 1
    %v417 = vld [vmem:[%s416] sm:$0x1]
    %s418 = scalar_lea.vmem %s7, 2
    %v419 = vld [vmem:[%s418] sm:$0x1]
    %s420 = scalar_lea.vmem %s7, 3
    %v421 = vld [vmem:[%s420] sm:$0x1]
    %s422 = scalar_lea.vmem %s7, 4
    %v423 = vld [vmem:[%s422] sm:$0x1]
    %s424 = scalar_lea.vmem %s7, 5
    %v425 = vld [vmem:[%s424] sm:$0x1]
    %s426 = scalar_lea.vmem %s7, 6
    %v427 = vld [vmem:[%s426] sm:$0x1]
    %vm428 = vcmask 261120
    %v430 = vsel %vm428, %v390, 0
    %v433 = vsel %vm428, %v391, 0
    %435 = vmatprep.subr.mxu0 0.0
    %436 = vmatpush1.msra.mxu0 %v392
    %437 = vmatprep.subr.mxu0 0.0
    %438 = vmatpush1.msra.mxu0 %v393
    %439 = vmatprep.subr.mxu0 0.0
    %440 = vmatpush1.msra.mxu0 %v394
    %441 = vmatprep.subr.mxu0 0.0
    %442 = vmatpush1.msra.mxu0 %v395
    %443 = vmatprep.subr.mxu0 0.0
    %444 = vmatpush1.msra.mxu0 0.0
    %445 = vmatprep.subr.mxu0 0.0
    %446 = vmatpush1.msra.mxu0 0.0
    %447 = vmatprep.subr.mxu0 0.0
    %448 = vmatpush1.msra.mxu0 0.0
    %449 = vmatprep.subr.mxu0 0.0
    %450 = vmatpush1.msra.mxu0 0.0
    %451 = vmatprep.subr.mxu0 0.0
    %452 = vmatpush1.msra.mxu0 0.0
    %453 = vmatprep.subr.mxu0 0.0
    %454 = vmatpush1.msra.mxu0 0.0
    %455 = vmatprep.subr.mxu0 0.0
    %456 = vmatpush1.msra.mxu0 0.0
    %457 = vmatprep.subr.mxu0 0.0
    %458 = vmatpush1.msra.mxu0 0.0
    %459 = vmatprep.subr.mxu0 0.0
    %460 = vmatpush1.msra.mxu0 0.0
    %461 = vmatprep.subr.mxu0 0.0
    %462 = vmatpush1.msra.mxu0 0.0
    %463 = vmatprep.subr.mxu0 0.0
    %464 = vmatpush1.msra.mxu0 0.0
    %465 = vmatprep.subr.mxu0 0.0
    %466 = vmatpush1.msra.mxu0 0.0
    %467 = vmatprep.subr.mxu0 0.0
    %468 = vmatpush1.msra.mxu0 0.0
    %469 = vmatprep.subr.mxu0 0.0
    %470 = vmatpush1.msra.mxu0 0.0
    %471 = vmatprep.subr.mxu0 0.0
    %472 = vmatpush1.msra.mxu0 0.0
    %473 = vmatprep.subr.mxu0 0.0
    %474 = vmatpush1.msra.mxu0 0.0
    %475 = vmatprep.subr.mxu0 0.0
    %476 = vmatpush1.msra.mxu0 0.0
    %477 = vmatprep.subr.mxu0 0.0
    %478 = vmatpush1.msra.mxu0 0.0
    %479 = vmatprep.subr.mxu0 0.0
    %480 = vmatpush1.msra.mxu0 0.0
    %481 = vmatprep.subr.mxu0 0.0
    %482 = vmatpush1.msra.mxu0 0.0
    %483 = vmatprep.subr.mxu0 0.0
    %484 = vmatpush1.msra.mxu0 0.0
    %485 = vmatprep.subr.mxu0 0.0
    %486 = vmatpush1.msra.mxu0 0.0
    %487 = vmatprep.subr.mxu0 0.0
    %488 = vmatpush1.msra.mxu0 0.0
    %489 = vmatprep.subr.mxu0 0.0
    %490 = vmatpush1.msra.mxu0 0.0
    %491 = vmatprep.subr.mxu0 0.0
    %492 = vmatpush1.msra.mxu0 0.0
    %493 = vmatprep.subr.mxu0 0.0
    %494 = vmatpush1.msra.mxu0 0.0
    %495 = vmatprep.subr.mxu0 0.0
    %496 = vmatpush1.msra.mxu0 0.0
    %497 = vmatprep.subr.mxu0 0.0
    %498 = vmatpush1.msra.mxu0 0.0
    %499 = vmatprep.mubr.f32.mxu0 0.0
    %500 = vmatmul.mubr.f32.gmra.mrb[0].mxu0 %v430
    %v501 = vpop.f32.mrb[0].mxu0
    %v502 = vadd.f32 0.0, %v501
    %v503 = vpop.f32.mrb[0].mxu0
    %504 = vmatprep.mubr.f32.mxu0 0.0
    %505 = vmatmul.mubr.f32.gmra.mrb[0].mxu0 %v433
    %v506 = vpop.f32.mrb[0].mxu0
    %v507 = vadd.f32 0.0, %v506
    %v508 = vpop.f32.mrb[0].mxu0
    %509 = vdwg.mxu0
    %510 = vmatprep.subr.mxu0 0.0
    %511 = vmatpush1.msra.mxu0 %v397
    %512 = vmatprep.subr.mxu0 0.0
    %513 = vmatpush1.msra.mxu0 %v398
    %514 = vmatprep.subr.mxu0 0.0
    %515 = vmatpush1.msra.mxu0 %v399
    %516 = vmatprep.subr.mxu0 0.0
    %517 = vmatpush1.msra.mxu0 %v400
    %518 = vmatprep.subr.mxu0 0.0
    %519 = vmatpush1.msra.mxu0 0.0
    %520 = vmatprep.subr.mxu0 0.0
    %521 = vmatpush1.msra.mxu0 0.0
    %522 = vmatprep.subr.mxu0 0.0
    %523 = vmatpush1.msra.mxu0 0.0
    %524 = vmatprep.subr.mxu0 0.0
    %525 = vmatpush1.msra.mxu0 0.0
    %526 = vmatprep.subr.mxu0 0.0
    %527 = vmatpush1.msra.mxu0 0.0
    %528 = vmatprep.subr.mxu0 0.0
    %529 = vmatpush1.msra.mxu0 0.0
    %530 = vmatprep.subr.mxu0 0.0
    %531 = vmatpush1.msra.mxu0 0.0
    %532 = vmatprep.subr.mxu0 0.0
    %533 = vmatpush1.msra.mxu0 0.0
    %534 = vmatprep.subr.mxu0 0.0
    %535 = vmatpush1.msra.mxu0 0.0
    %536 = vmatprep.subr.mxu0 0.0
    %537 = vmatpush1.msra.mxu0 0.0
    %538 = vmatprep.subr.mxu0 0.0
    %539 = vmatpush1.msra.mxu0 0.0
    %540 = vmatprep.subr.mxu0 0.0
    %541 = vmatpush1.msra.mxu0 0.0
    %542 = vmatprep.subr.mxu0 0.0
    %543 = vmatpush1.msra.mxu0 0.0
    %544 = vmatprep.subr.mxu0 0.0
    %545 = vmatpush1.msra.mxu0 0.0
    %546 = vmatprep.subr.mxu0 0.0
    %547 = vmatpush1.msra.mxu0 0.0
    %548 = vmatprep.subr.mxu0 0.0
    %549 = vmatpush1.msra.mxu0 0.0
    %550 = vmatprep.subr.mxu0 0.0
    %551 = vmatpush1.msra.mxu0 0.0
    %552 = vmatprep.subr.mxu0 0.0
    %553 = vmatpush1.msra.mxu0 0.0
    %554 = vmatprep.subr.mxu0 0.0
    %555 = vmatpush1.msra.mxu0 0.0
    %556 = vmatprep.subr.mxu0 0.0
    %557 = vmatpush1.msra.mxu0 0.0
    %558 = vmatprep.subr.mxu0 0.0
    %559 = vmatpush1.msra.mxu0 0.0
    %560 = vmatprep.subr.mxu0 0.0
    %561 = vmatpush1.msra.mxu0 0.0
    %562 = vmatprep.subr.mxu0 0.0
    %563 = vmatpush1.msra.mxu0 0.0
    %564 = vmatprep.subr.mxu0 0.0
    %565 = vmatpush1.msra.mxu0 0.0
    %566 = vmatprep.subr.mxu0 0.0
    %567 = vmatpush1.msra.mxu0 0.0
    %568 = vmatprep.subr.mxu0 0.0
    %569 = vmatpush1.msra.mxu0 0.0
    %570 = vmatprep.subr.mxu0 0.0
    %571 = vmatpush1.msra.mxu0 0.0
    %572 = vmatprep.subr.mxu0 0.0
    %573 = vmatpush1.msra.mxu0 0.0
    %574 = vmatprep.mubr.f32.mxu0 0.0
    %575 = vmatmul.mubr.f32.gmra.mrb[0].mxu0 %v430
    %v576 = vpop.f32.mrb[0].mxu0
    %v577 = vadd.f32 0.0, %v576
    %v578 = vpop.f32.mrb[0].mxu0
    %579 = vmatprep.mubr.f32.mxu0 0.0
    %580 = vmatmul.mubr.f32.gmra.mrb[0].mxu0 %v433
    %v581 = vpop.f32.mrb[0].mxu0
    %v582 = vadd.f32 0.0, %v581
    %v583 = vpop.f32.mrb[0].mxu0
    %584 = vdwg.mxu0
    %v586 = vsel %vm124, %v61, 0
    %v589 = vsel %vm124, %v62, 0
    %v592 = vsel %vm124, %v63, 0
    %v595 = vsel %vm124, %v64, 0
    %v598 = vsel %vm124, %v65, 0
    %v601 = vsel %vm124, %v66, 0
    %603 = vmatprep.subr.mxu0 0.0
    %604 = vmatpush1.msra.mxu0 %v577
    %605 = vmatprep.subr.mxu0 0.0
    %606 = vmatpush1.msra.mxu0 %v582
    %607 = vmatprep.subr.mxu0 0.0
    %608 = vmatpush1.msra.mxu0 0.0
    %609 = vmatprep.subr.mxu0 0.0
    %610 = vmatpush1.msra.mxu0 0.0
    %611 = vmatprep.subr.mxu0 0.0
    %612 = vmatpush1.msra.mxu0 0.0
    %613 = vmatprep.subr.mxu0 0.0
    %614 = vmatpush1.msra.mxu0 0.0
    %615 = vmatprep.subr.mxu0 0.0
    %616 = vmatpush1.msra.mxu0 0.0
    %617 = vmatprep.subr.mxu0 0.0
    %618 = vmatpush1.msra.mxu0 0.0
    %619 = vmatprep.subr.mxu0 0.0
    %620 = vmatpush1.msra.mxu0 0.0
    %621 = vmatprep.subr.mxu0 0.0
    %622 = vmatpush1.msra.mxu0 0.0
    %623 = vmatprep.subr.mxu0 0.0
    %624 = vmatpush1.msra.mxu0 0.0
    %625 = vmatprep.subr.mxu0 0.0
    %626 = vmatpush1.msra.mxu0 0.0
    %627 = vmatprep.subr.mxu0 0.0
    %628 = vmatpush1.msra.mxu0 0.0
    %629 = vmatprep.subr.mxu0 0.0
    %630 = vmatpush1.msra.mxu0 0.0
    %631 = vmatprep.subr.mxu0 0.0
    %632 = vmatpush1.msra.mxu0 0.0
    %633 = vmatprep.subr.mxu0 0.0
    %634 = vmatpush1.msra.mxu0 0.0
    %635 = vmatprep.subr.mxu0 0.0
    %636 = vmatpush1.msra.mxu0 0.0
    %637 = vmatprep.subr.mxu0 0.0
    %638 = vmatpush1.msra.mxu0 0.0
    %639 = vmatprep.subr.mxu0 0.0
    %640 = vmatpush1.msra.mxu0 0.0
    %641 = vmatprep.subr.mxu0 0.0
    %642 = vmatpush1.msra.mxu0 0.0
    %643 = vmatprep.subr.mxu0 0.0
    %644 = vmatpush1.msra.mxu0 0.0
    %645 = vmatprep.subr.mxu0 0.0
    %646 = vmatpush1.msra.mxu0 0.0
    %647 = vmatprep.subr.mxu0 0.0
    %648 = vmatpush1.msra.mxu0 0.0
    %649 = vmatprep.subr.mxu0 0.0
    %650 = vmatpush1.msra.mxu0 0.0
    %651 = vmatprep.subr.mxu0 0.0
    %652 = vmatpush1.msra.mxu0 0.0
    %653 = vmatprep.subr.mxu0 0.0
    %654 = vmatpush1.msra.mxu0 0.0
    %655 = vmatprep.subr.mxu0 0.0
    %656 = vmatpush1.msra.mxu0 0.0
    %657 = vmatprep.subr.mxu0 0.0
    %658 = vmatpush1.msra.mxu0 0.0
    %659 = vmatprep.subr.mxu0 0.0
    %660 = vmatpush1.msra.mxu0 0.0
    %661 = vmatprep.subr.mxu0 0.0
    %662 = vmatpush1.msra.mxu0 0.0
    %663 = vmatprep.subr.mxu0 0.0
    %664 = vmatpush1.msra.mxu0 0.0
    %665 = vmatprep.subr.mxu0 0.0
    %666 = vmatpush1.msra.mxu0 0.0
    %667 = vmatprep.mubr.f32.mxu0 0.0
    %668 = vmatmul.mubr.f32.gmra.mrb[0].mxu0 %v586
    %v669 = vpop.f32.mrb[0].mxu0
    %v670 = vadd.f32 0.0, %v669
    %v671 = vpop.f32.mrb[0].mxu0
    %672 = vmatprep.mubr.f32.mxu0 0.0
    %673 = vmatmul.mubr.f32.gmra.mrb[0].mxu0 %v589
    %v674 = vpop.f32.mrb[0].mxu0
    %v675 = vadd.f32 0.0, %v674
    %v676 = vpop.f32.mrb[0].mxu0
    %677 = vmatprep.mubr.f32.mxu0 0.0
    %678 = vmatmul.mubr.f32.gmra.mrb[0].mxu0 %v592
    %v679 = vpop.f32.mrb[0].mxu0
    %v680 = vadd.f32 0.0, %v679
    %v681 = vpop.f32.mrb[0].mxu0
    %682 = vmatprep.mubr.f32.mxu0 0.0
    %683 = vmatmul.mubr.f32.gmra.mrb[0].mxu0 %v595
    %v684 = vpop.f32.mrb[0].mxu0
    %v685 = vadd.f32 0.0, %v684
    %v686 = vpop.f32.mrb[0].mxu0
    %687 = vmatprep.mubr.f32.mxu0 0.0
    %688 = vmatmul.mubr.f32.gmra.mrb[0].mxu0 %v598
    %v689 = vpop.f32.mrb[0].mxu0
    %v690 = vadd.f32 0.0, %v689
    %v691 = vpop.f32.mrb[0].mxu0
    %692 = vmatprep.mubr.f32.mxu0 0.0
    %693 = vmatmul.mubr.f32.gmra.mrb[0].mxu0 %v601
    %v694 = vpop.f32.mrb[0].mxu0
    %v695 = vadd.f32 0.0, %v694
    %v696 = vpop.f32.mrb[0].mxu0
    %697 = vdwg.mxu0
    %v699 = vsel %vm124, %v54, 0
    %v702 = vsel %vm124, %v55, 0
    %v705 = vsel %vm124, %v56, 0
    %v708 = vsel %vm124, %v57, 0
    %v711 = vsel %vm124, %v58, 0
    %v714 = vsel %vm124, %v59, 0
    %716 = vmatprep.subr.mxu0 0.0
    %717 = vmatpush1.msra.mxu0 %v502
    %718 = vmatprep.subr.mxu0 0.0
    %719 = vmatpush1.msra.mxu0 %v507
    %720 = vmatprep.subr.mxu0 0.0
    %721 = vmatpush1.msra.mxu0 0.0
    %722 = vmatprep.subr.mxu0 0.0
    %723 = vmatpush1.msra.mxu0 0.0
    %724 = vmatprep.subr.mxu0 0.0
    %725 = vmatpush1.msra.mxu0 0.0
    %726 = vmatprep.subr.mxu0 0.0
    %727 = vmatpush1.msra.mxu0 0.0
    %728 = vmatprep.subr.mxu0 0.0
    %729 = vmatpush1.msra.mxu0 0.0
    %730 = vmatprep.subr.mxu0 0.0
    %731 = vmatpush1.msra.mxu0 0.0
    %732 = vmatprep.subr.mxu0 0.0
    %733 = vmatpush1.msra.mxu0 0.0
    %734 = vmatprep.subr.mxu0 0.0
    %735 = vmatpush1.msra.mxu0 0.0
    %736 = vmatprep.subr.mxu0 0.0
    %737 = vmatpush1.msra.mxu0 0.0
    %738 = vmatprep.subr.mxu0 0.0
    %739 = vmatpush1.msra.mxu0 0.0
    %740 = vmatprep.subr.mxu0 0.0
    %741 = vmatpush1.msra.mxu0 0.0
    %742 = vmatprep.subr.mxu0 0.0
    %743 = vmatpush1.msra.mxu0 0.0
    %744 = vmatprep.subr.mxu0 0.0
    %745 = vmatpush1.msra.mxu0 0.0
    %746 = vmatprep.subr.mxu0 0.0
    %747 = vmatpush1.msra.mxu0 0.0
    %748 = vmatprep.subr.mxu0 0.0
    %749 = vmatpush1.msra.mxu0 0.0
    %750 = vmatprep.subr.mxu0 0.0
    %751 = vmatpush1.msra.mxu0 0.0
    %752 = vmatprep.subr.mxu0 0.0
    %753 = vmatpush1.msra.mxu0 0.0
    %754 = vmatprep.subr.mxu0 0.0
    %755 = vmatpush1.msra.mxu0 0.0
    %756 = vmatprep.subr.mxu0 0.0
    %757 = vmatpush1.msra.mxu0 0.0
    %758 = vmatprep.subr.mxu0 0.0
    %759 = vmatpush1.msra.mxu0 0.0
    %760 = vmatprep.subr.mxu0 0.0
    %761 = vmatpush1.msra.mxu0 0.0
    %762 = vmatprep.subr.mxu0 0.0
    %763 = vmatpush1.msra.mxu0 0.0
    %764 = vmatprep.subr.mxu0 0.0
    %765 = vmatpush1.msra.mxu0 0.0
    %766 = vmatprep.subr.mxu0 0.0
    %767 = vmatpush1.msra.mxu0 0.0
    %768 = vmatprep.subr.mxu0 0.0
    %769 = vmatpush1.msra.mxu0 0.0
    %770 = vmatprep.subr.mxu0 0.0
    %771 = vmatpush1.msra.mxu0 0.0
    %772 = vmatprep.subr.mxu0 0.0
    %773 = vmatpush1.msra.mxu0 0.0
    %774 = vmatprep.subr.mxu0 0.0
    %775 = vmatpush1.msra.mxu0 0.0
    %776 = vmatprep.subr.mxu0 0.0
    %777 = vmatpush1.msra.mxu0 0.0
    %778 = vmatprep.subr.mxu0 0.0
    %779 = vmatpush1.msra.mxu0 0.0
    %780 = vmatprep.mubr.f32.mxu0 0.0
    %781 = vmatmul.mubr.f32.gmra.mrb[0].mxu0 %v699
    %v782 = vpop.f32.mrb[0].mxu0
    %v783 = vadd.f32 %v670, %v782
    %v784 = vpop.f32.mrb[0].mxu0
    %785 = vmatprep.mubr.f32.mxu0 0.0
    %786 = vmatmul.mubr.f32.gmra.mrb[0].mxu0 %v702
    %v787 = vpop.f32.mrb[0].mxu0
    %v788 = vadd.f32 %v675, %v787
    %v789 = vpop.f32.mrb[0].mxu0
    %790 = vmatprep.mubr.f32.mxu0 0.0
    %791 = vmatmul.mubr.f32.gmra.mrb[0].mxu0 %v705
    %v792 = vpop.f32.mrb[0].mxu0
    %v793 = vadd.f32 %v680, %v792
    %v794 = vpop.f32.mrb[0].mxu0
    %795 = vmatprep.mubr.f32.mxu0 0.0
    %796 = vmatmul.mubr.f32.gmra.mrb[0].mxu0 %v708
    %v797 = vpop.f32.mrb[0].mxu0
    %v798 = vadd.f32 %v685, %v797
    %v799 = vpop.f32.mrb[0].mxu0
    %800 = vmatprep.mubr.f32.mxu0 0.0
    %801 = vmatmul.mubr.f32.gmra.mrb[0].mxu0 %v711
    %v802 = vpop.f32.mrb[0].mxu0
    %v803 = vadd.f32 %v690, %v802
    %v804 = vpop.f32.mrb[0].mxu0
    %805 = vmatprep.mubr.f32.mxu0 0.0
    %806 = vmatmul.mubr.f32.gmra.mrb[0].mxu0 %v714
    %v807 = vpop.f32.mrb[0].mxu0
    %v808 = vadd.f32 %v695, %v807
    %v809 = vpop.f32.mrb[0].mxu0
    %810 = vdwg.mxu0
    %v812 = vlaneseq
    %v813 = vshrl.u32 %v812, 7
    %v814 = vsub.s32 0, %v813
    %v815 = vrot.slane %v417, %v814
    %v817 = vadd.f32 %v783, %v815
    %v818 = vadd.f32 %v788, %v815
    %v819 = vadd.f32 %v793, %v815
    %v820 = vadd.f32 %v798, %v815
    %v821 = vadd.f32 %v803, %v815
    %v822 = vadd.f32 %v808, %v815
    %v823 = vmax.f32 %v817, 0.0
    %v824 = vmax.f32 %v818, 0.0
    %v825 = vmax.f32 %v819, 0.0
    %v826 = vmax.f32 %v820, 0.0
    %v827 = vmax.f32 %v821, 0.0
    %v828 = vmax.f32 %v822, 0.0
    %v830 = vlaneseq
    %v831 = vshrl.u32 %v830, 7
    %v832 = vsub.s32 0, %v831
    %v833 = vrot.slane %v419, %v832
    %v836 = vsel %vm428, %v823, 0
    %v839 = vsel %vm428, %v824, 0
    %v842 = vsel %vm428, %v825, 0
    %v845 = vsel %vm428, %v826, 0
    %v848 = vsel %vm428, %v827, 0
    %v851 = vsel %vm428, %v828, 0
    %853 = vmatprep.subr.mxu0 0.0
    %854 = vmatpush1.msra.mxu0 %v402
    %855 = vmatprep.subr.mxu0 0.0
    %856 = vmatpush1.msra.mxu0 %v403
    %857 = vmatprep.subr.mxu0 0.0
    %858 = vmatpush1.msra.mxu0 %v404
    %859 = vmatprep.subr.mxu0 0.0
    %860 = vmatpush1.msra.mxu0 %v405
    %861 = vmatprep.subr.mxu0 0.0
    %862 = vmatpush1.msra.mxu0 0.0
    %863 = vmatprep.subr.mxu0 0.0
    %864 = vmatpush1.msra.mxu0 0.0
    %865 = vmatprep.subr.mxu0 0.0
    %866 = vmatpush1.msra.mxu0 0.0
    %867 = vmatprep.subr.mxu0 0.0
    %868 = vmatpush1.msra.mxu0 0.0
    %869 = vmatprep.subr.mxu0 0.0
    %870 = vmatpush1.msra.mxu0 0.0
    %871 = vmatprep.subr.mxu0 0.0
    %872 = vmatpush1.msra.mxu0 0.0
    %873 = vmatprep.subr.mxu0 0.0
    %874 = vmatpush1.msra.mxu0 0.0
    %875 = vmatprep.subr.mxu0 0.0
    %876 = vmatpush1.msra.mxu0 0.0
    %877 = vmatprep.subr.mxu0 0.0
    %878 = vmatpush1.msra.mxu0 0.0
    %879 = vmatprep.subr.mxu0 0.0
    %880 = vmatpush1.msra.mxu0 0.0
    %881 = vmatprep.subr.mxu0 0.0
    %882 = vmatpush1.msra.mxu0 0.0
    %883 = vmatprep.subr.mxu0 0.0
    %884 = vmatpush1.msra.mxu0 0.0
    %885 = vmatprep.subr.mxu0 0.0
    %886 = vmatpush1.msra.mxu0 0.0
    %887 = vmatprep.subr.mxu0 0.0
    %888 = vmatpush1.msra.mxu0 0.0
    %889 = vmatprep.subr.mxu0 0.0
    %890 = vmatpush1.msra.mxu0 0.0
    %891 = vmatprep.subr.mxu0 0.0
    %892 = vmatpush1.msra.mxu0 0.0
    %893 = vmatprep.subr.mxu0 0.0
    %894 = vmatpush1.msra.mxu0 0.0
    %895 = vmatprep.subr.mxu0 0.0
    %896 = vmatpush1.msra.mxu0 0.0
    %897 = vmatprep.subr.mxu0 0.0
    %898 = vmatpush1.msra.mxu0 0.0
    %899 = vmatprep.subr.mxu0 0.0
    %900 = vmatpush1.msra.mxu0 0.0
    %901 = vmatprep.subr.mxu0 0.0
    %902 = vmatpush1.msra.mxu0 0.0
    %903 = vmatprep.subr.mxu0 0.0
    %904 = vmatpush1.msra.mxu0 0.0
    %905 = vmatprep.subr.mxu0 0.0
    %906 = vmatpush1.msra.mxu0 0.0
    %907 = vmatprep.subr.mxu0 0.0
    %908 = vmatpush1.msra.mxu0 0.0
    %909 = vmatprep.subr.mxu0 0.0
    %910 = vmatpush1.msra.mxu0 0.0
    %911 = vmatprep.subr.mxu0 0.0
    %912 = vmatpush1.msra.mxu0 0.0
    %913 = vmatprep.subr.mxu0 0.0
    %914 = vmatpush1.msra.mxu0 0.0
    %915 = vmatprep.subr.mxu0 0.0
    %916 = vmatpush1.msra.mxu0 0.0
    %917 = vmatprep.mubr.f32.mxu0 0.0
    %918 = vmatmul.mubr.f32.gmra.mrb[0].mxu0 %v836
    %v919 = vpop.f32.mrb[0].mxu0
    %v920 = vadd.f32 %v833, %v919
    %v921 = vpop.f32.mrb[0].mxu0
    %922 = vmatprep.mubr.f32.mxu0 0.0
    %923 = vmatmul.mubr.f32.gmra.mrb[0].mxu0 %v839
    %v924 = vpop.f32.mrb[0].mxu0
    %v925 = vadd.f32 %v833, %v924
    %v926 = vpop.f32.mrb[0].mxu0
    %927 = vmatprep.mubr.f32.mxu0 0.0
    %928 = vmatmul.mubr.f32.gmra.mrb[0].mxu0 %v842
    %v929 = vpop.f32.mrb[0].mxu0
    %v930 = vadd.f32 %v833, %v929
    %v931 = vpop.f32.mrb[0].mxu0
    %932 = vmatprep.mubr.f32.mxu0 0.0
    %933 = vmatmul.mubr.f32.gmra.mrb[0].mxu0 %v845
    %v934 = vpop.f32.mrb[0].mxu0
    %v935 = vadd.f32 %v833, %v934
    %v936 = vpop.f32.mrb[0].mxu0
    %937 = vmatprep.mubr.f32.mxu0 0.0
    %938 = vmatmul.mubr.f32.gmra.mrb[0].mxu0 %v848
    %v939 = vpop.f32.mrb[0].mxu0
    %v940 = vadd.f32 %v833, %v939
    %v941 = vpop.f32.mrb[0].mxu0
    %942 = vmatprep.mubr.f32.mxu0 0.0
    %943 = vmatmul.mubr.f32.gmra.mrb[0].mxu0 %v851
    %v944 = vpop.f32.mrb[0].mxu0
    %v945 = vadd.f32 %v833, %v944
    %v946 = vpop.f32.mrb[0].mxu0
    %947 = vdwg.mxu0
    %v948 = vmax.f32 %v920, 0.0
    %v949 = vmax.f32 %v925, 0.0
    %v950 = vmax.f32 %v930, 0.0
    %v951 = vmax.f32 %v935, 0.0
    %v952 = vmax.f32 %v940, 0.0
    %v953 = vmax.f32 %v945, 0.0
    %v955 = vlaneseq
    %v956 = vshrl.u32 %v955, 7
    %v957 = vsub.s32 0, %v956
    %v958 = vrot.slane %v421, %v957
    %v961 = vsel %vm428, %v948, 0
    %v964 = vsel %vm428, %v949, 0
    %v967 = vsel %vm428, %v950, 0
    %v970 = vsel %vm428, %v951, 0
    %v973 = vsel %vm428, %v952, 0
    %v976 = vsel %vm428, %v953, 0
    %978 = vmatprep.subr.mxu0 0.0
    %979 = vmatpush1.msra.mxu0 %v407
    %980 = vmatprep.subr.mxu0 0.0
    %981 = vmatpush1.msra.mxu0 %v408
    %982 = vmatprep.subr.mxu0 0.0
    %983 = vmatpush1.msra.mxu0 %v409
    %984 = vmatprep.subr.mxu0 0.0
    %985 = vmatpush1.msra.mxu0 %v410
    %986 = vmatprep.subr.mxu0 0.0
    %987 = vmatpush1.msra.mxu0 0.0
    %988 = vmatprep.subr.mxu0 0.0
    %989 = vmatpush1.msra.mxu0 0.0
    %990 = vmatprep.subr.mxu0 0.0
    %991 = vmatpush1.msra.mxu0 0.0
    %992 = vmatprep.subr.mxu0 0.0
    %993 = vmatpush1.msra.mxu0 0.0
    %994 = vmatprep.subr.mxu0 0.0
    %995 = vmatpush1.msra.mxu0 0.0
    %996 = vmatprep.subr.mxu0 0.0
    %997 = vmatpush1.msra.mxu0 0.0
    %998 = vmatprep.subr.mxu0 0.0
    %999 = vmatpush1.msra.mxu0 0.0
    %1000 = vmatprep.subr.mxu0 0.0
    %1001 = vmatpush1.msra.mxu0 0.0
    %1002 = vmatprep.subr.mxu0 0.0
    %1003 = vmatpush1.msra.mxu0 0.0
    %1004 = vmatprep.subr.mxu0 0.0
    %1005 = vmatpush1.msra.mxu0 0.0
    %1006 = vmatprep.subr.mxu0 0.0
    %1007 = vmatpush1.msra.mxu0 0.0
    %1008 = vmatprep.subr.mxu0 0.0
    %1009 = vmatpush1.msra.mxu0 0.0
    %1010 = vmatprep.subr.mxu0 0.0
    %1011 = vmatpush1.msra.mxu0 0.0
    %1012 = vmatprep.subr.mxu0 0.0
    %1013 = vmatpush1.msra.mxu0 0.0
    %1014 = vmatprep.subr.mxu0 0.0
    %1015 = vmatpush1.msra.mxu0 0.0
    %1016 = vmatprep.subr.mxu0 0.0
    %1017 = vmatpush1.msra.mxu0 0.0
    %1018 = vmatprep.subr.mxu0 0.0
    %1019 = vmatpush1.msra.mxu0 0.0
    %1020 = vmatprep.subr.mxu0 0.0
    %1021 = vmatpush1.msra.mxu0 0.0
    %1022 = vmatprep.subr.mxu0 0.0
    %1023 = vmatpush1.msra.mxu0 0.0
    %1024 = vmatprep.subr.mxu0 0.0
    %1025 = vmatpush1.msra.mxu0 0.0
    %1026 = vmatprep.subr.mxu0 0.0
    %1027 = vmatpush1.msra.mxu0 0.0
    %1028 = vmatprep.subr.mxu0 0.0
    %1029 = vmatpush1.msra.mxu0 0.0
    %1030 = vmatprep.subr.mxu0 0.0
    %1031 = vmatpush1.msra.mxu0 0.0
    %1032 = vmatprep.subr.mxu0 0.0
    %1033 = vmatpush1.msra.mxu0 0.0
    %1034 = vmatprep.subr.mxu0 0.0
    %1035 = vmatpush1.msra.mxu0 0.0
    %1036 = vmatprep.subr.mxu0 0.0
    %1037 = vmatpush1.msra.mxu0 0.0
    %1038 = vmatprep.subr.mxu0 0.0
    %1039 = vmatpush1.msra.mxu0 0.0
    %1040 = vmatprep.subr.mxu0 0.0
    %1041 = vmatpush1.msra.mxu0 0.0
    %1042 = vmatprep.mubr.f32.mxu0 0.0
    %1043 = vmatmul.mubr.f32.gmra.mrb[0].mxu0 %v961
    %v1044 = vpop.f32.mrb[0].mxu0
    %v1045 = vadd.f32 %v958, %v1044
    %v1046 = vpop.f32.mrb[0].mxu0
    %1047 = vmatprep.mubr.f32.mxu0 0.0
    %1048 = vmatmul.mubr.f32.gmra.mrb[0].mxu0 %v964
    %v1049 = vpop.f32.mrb[0].mxu0
    %v1050 = vadd.f32 %v958, %v1049
    %v1051 = vpop.f32.mrb[0].mxu0
    %1052 = vmatprep.mubr.f32.mxu0 0.0
    %1053 = vmatmul.mubr.f32.gmra.mrb[0].mxu0 %v967
    %v1054 = vpop.f32.mrb[0].mxu0
    %v1055 = vadd.f32 %v958, %v1054
    %v1056 = vpop.f32.mrb[0].mxu0
    %1057 = vmatprep.mubr.f32.mxu0 0.0
    %1058 = vmatmul.mubr.f32.gmra.mrb[0].mxu0 %v970
    %v1059 = vpop.f32.mrb[0].mxu0
    %v1060 = vadd.f32 %v958, %v1059
    %v1061 = vpop.f32.mrb[0].mxu0
    %1062 = vmatprep.mubr.f32.mxu0 0.0
    %1063 = vmatmul.mubr.f32.gmra.mrb[0].mxu0 %v973
    %v1064 = vpop.f32.mrb[0].mxu0
    %v1065 = vadd.f32 %v958, %v1064
    %v1066 = vpop.f32.mrb[0].mxu0
    %1067 = vmatprep.mubr.f32.mxu0 0.0
    %1068 = vmatmul.mubr.f32.gmra.mrb[0].mxu0 %v976
    %v1069 = vpop.f32.mrb[0].mxu0
    %v1070 = vadd.f32 %v958, %v1069
    %v1071 = vpop.f32.mrb[0].mxu0
    %1072 = vdwg.mxu0
    %v1073 = vmax.f32 %v1045, 0.0
    %v1074 = vmax.f32 %v1050, 0.0
    %v1075 = vmax.f32 %v1055, 0.0
    %v1076 = vmax.f32 %v1060, 0.0
    %v1077 = vmax.f32 %v1065, 0.0
    %v1078 = vmax.f32 %v1070, 0.0
    %v1080 = vlaneseq
    %v1081 = vshrl.u32 %v1080, 7
    %v1082 = vsub.s32 0, %v1081
    %v1083 = vrot.slane %v423, %v1082
    %v1085 = vmul.f32 %v1073, %v1083
    %v1086 = vmul.f32 %v1074, %v1083
    %v1087 = vmul.f32 %v1075, %v1083
    %v1088 = vmul.f32 %v1076, %v1083
    %v1089 = vmul.f32 %v1077, %v1083
    %v1090 = vmul.f32 %v1078, %v1083
    %v1092 = vlaneseq
    %v1093 = vshrl.u32 %v1092, 7
    %v1094 = vsub.s32 0, %v1093
    %v1095 = vrot.slane %v425, %v1094
    %v1097 = vadd.f32 %v1085, %v1095
    %v1098 = vadd.f32 %v1086, %v1095
    %v1099 = vadd.f32 %v1087, %v1095
    %v1100 = vadd.f32 %v1088, %v1095
    %v1101 = vadd.f32 %v1089, %v1095
    %v1102 = vadd.f32 %v1090, %v1095
    %v1104 = vlaneseq
    %v1105 = vshrl.u32 %v1104, 7
    %v1106 = vsub.s32 0, %v1105
    %v1107 = vrot.slane %v427, %v1106
    %1109 = vmatprep.subr.mxu0 0.0
    %1110 = vmatpush1.msra.mxu0 %v412
    %1111 = vmatprep.subr.mxu0 0.0
    %1112 = vmatpush1.msra.mxu0 %v413
    %1113 = vmatprep.subr.mxu0 0.0
    %1114 = vmatpush1.msra.mxu0 %v414
    %1115 = vmatprep.subr.mxu0 0.0
    %1116 = vmatpush1.msra.mxu0 %v415
    %1117 = vmatprep.subr.mxu0 0.0
    %1118 = vmatpush1.msra.mxu0 0.0
    %1119 = vmatprep.subr.mxu0 0.0
    %1120 = vmatpush1.msra.mxu0 0.0
    %1121 = vmatprep.subr.mxu0 0.0
    %1122 = vmatpush1.msra.mxu0 0.0
    %1123 = vmatprep.subr.mxu0 0.0
    %1124 = vmatpush1.msra.mxu0 0.0
    %1125 = vmatprep.subr.mxu0 0.0
    %1126 = vmatpush1.msra.mxu0 0.0
    %1127 = vmatprep.subr.mxu0 0.0
    %1128 = vmatpush1.msra.mxu0 0.0
    %1129 = vmatprep.subr.mxu0 0.0
    %1130 = vmatpush1.msra.mxu0 0.0
    %1131 = vmatprep.subr.mxu0 0.0
    %1132 = vmatpush1.msra.mxu0 0.0
    %1133 = vmatprep.subr.mxu0 0.0
    %1134 = vmatpush1.msra.mxu0 0.0
    %1135 = vmatprep.subr.mxu0 0.0
    %1136 = vmatpush1.msra.mxu0 0.0
    %1137 = vmatprep.subr.mxu0 0.0
    %1138 = vmatpush1.msra.mxu0 0.0
    %1139 = vmatprep.subr.mxu0 0.0
    %1140 = vmatpush1.msra.mxu0 0.0
    %1141 = vmatprep.subr.mxu0 0.0
    %1142 = vmatpush1.msra.mxu0 0.0
    %1143 = vmatprep.subr.mxu0 0.0
    %1144 = vmatpush1.msra.mxu0 0.0
    %1145 = vmatprep.subr.mxu0 0.0
    %1146 = vmatpush1.msra.mxu0 0.0
    %1147 = vmatprep.subr.mxu0 0.0
    %1148 = vmatpush1.msra.mxu0 0.0
    %1149 = vmatprep.subr.mxu0 0.0
    %1150 = vmatpush1.msra.mxu0 0.0
    %1151 = vmatprep.subr.mxu0 0.0
    %1152 = vmatpush1.msra.mxu0 0.0
    %1153 = vmatprep.subr.mxu0 0.0
    %1154 = vmatpush1.msra.mxu0 0.0
    %1155 = vmatprep.subr.mxu0 0.0
    %1156 = vmatpush1.msra.mxu0 0.0
    %1157 = vmatprep.subr.mxu0 0.0
    %1158 = vmatpush1.msra.mxu0 0.0
    %1159 = vmatprep.subr.mxu0 0.0
    %1160 = vmatpush1.msra.mxu0 0.0
    %1161 = vmatprep.subr.mxu0 0.0
    %1162 = vmatpush1.msra.mxu0 0.0
    %1163 = vmatprep.subr.mxu0 0.0
    %1164 = vmatpush1.msra.mxu0 0.0
    %1165 = vmatprep.subr.mxu0 0.0
    %1166 = vmatpush1.msra.mxu0 0.0
    %1167 = vmatprep.subr.mxu0 0.0
    %1168 = vmatpush1.msra.mxu0 0.0
    %1169 = vmatprep.subr.mxu0 0.0
    %1170 = vmatpush1.msra.mxu0 0.0
    %1171 = vmatprep.subr.mxu0 0.0
    %1172 = vmatpush1.msra.mxu0 0.0
    %1173 = vmatprep.mubr.f32.mxu0 0.0
    %1174 = vmatmul.mubr.f32.gmra.mrb[0].mxu0 %v430
    %v1175 = vpop.f32.mrb[0].mxu0
    %v1176 = vadd.f32 %v1107, %v1175
    %v1177 = vpop.f32.mrb[0].mxu0
    %1178 = vmatprep.mubr.f32.mxu0 0.0
    %1179 = vmatmul.mubr.f32.gmra.mrb[0].mxu0 %v433
    %v1180 = vpop.f32.mrb[0].mxu0
    %v1181 = vadd.f32 %v1107, %v1180
    %v1182 = vpop.f32.mrb[0].mxu0
    %1183 = vdwg.mxu0
    %v1184 = vmax.f32 %v1176, 0.0
    %v1185 = vmax.f32 %v1181, 0.0
    %vm1186 = vcmask 392192
    %v1188 = vsel %vm1186, %v67, 0
    %v1191 = vsel %vm1186, %v68, 0
    %1193 = vmatprep.subr.mxu0 0.0
    %1194 = vmatpush1.msra.mxu0 %v1097
    %1195 = vmatprep.subr.mxu0 0.0
    %1196 = vmatpush1.msra.mxu0 %v1098
    %1197 = vmatprep.subr.mxu0 0.0
    %1198 = vmatpush1.msra.mxu0 %v1099
    %1199 = vmatprep.subr.mxu0 0.0
    %1200 = vmatpush1.msra.mxu0 %v1100
    %1201 = vmatprep.subr.mxu0 0.0
    %1202 = vmatpush1.msra.mxu0 %v1101
    %1203 = vmatprep.subr.mxu0 0.0
    %1204 = vmatpush1.msra.mxu0 %v1102
    %1205 = vmatprep.subr.mxu0 0.0
    %1206 = vmatpush1.msra.mxu0 0.0
    %1207 = vmatprep.subr.mxu0 0.0
    %1208 = vmatpush1.msra.mxu0 0.0
    %1209 = vmatprep.subr.mxu0 0.0
    %1210 = vmatpush1.msra.mxu0 0.0
    %1211 = vmatprep.subr.mxu0 0.0
    %1212 = vmatpush1.msra.mxu0 0.0
    %1213 = vmatprep.subr.mxu0 0.0
    %1214 = vmatpush1.msra.mxu0 0.0
    %1215 = vmatprep.subr.mxu0 0.0
    %1216 = vmatpush1.msra.mxu0 0.0
    %1217 = vmatprep.subr.mxu0 0.0
    %1218 = vmatpush1.msra.mxu0 0.0
    %1219 = vmatprep.subr.mxu0 0.0
    %1220 = vmatpush1.msra.mxu0 0.0
    %1221 = vmatprep.subr.mxu0 0.0
    %1222 = vmatpush1.msra.mxu0 0.0
    %1223 = vmatprep.subr.mxu0 0.0
    %1224 = vmatpush1.msra.mxu0 0.0
    %1225 = vmatprep.subr.mxu0 0.0
    %1226 = vmatpush1.msra.mxu0 0.0
    %1227 = vmatprep.subr.mxu0 0.0
    %1228 = vmatpush1.msra.mxu0 0.0
    %1229 = vmatprep.subr.mxu0 0.0
    %1230 = vmatpush1.msra.mxu0 0.0
    %1231 = vmatprep.subr.mxu0 0.0
    %1232 = vmatpush1.msra.mxu0 0.0
    %1233 = vmatprep.subr.mxu0 0.0
    %1234 = vmatpush1.msra.mxu0 0.0
    %1235 = vmatprep.subr.mxu0 0.0
    %1236 = vmatpush1.msra.mxu0 0.0
    %1237 = vmatprep.subr.mxu0 0.0
    %1238 = vmatpush1.msra.mxu0 0.0
    %1239 = vmatprep.subr.mxu0 0.0
    %1240 = vmatpush1.msra.mxu0 0.0
    %1241 = vmatprep.subr.mxu0 0.0
    %1242 = vmatpush1.msra.mxu0 0.0
    %1243 = vmatprep.subr.mxu0 0.0
    %1244 = vmatpush1.msra.mxu0 0.0
    %1245 = vmatprep.subr.mxu0 0.0
    %1246 = vmatpush1.msra.mxu0 0.0
    %1247 = vmatprep.subr.mxu0 0.0
    %1248 = vmatpush1.msra.mxu0 0.0
    %1249 = vmatprep.subr.mxu0 0.0
    %1250 = vmatpush1.msra.mxu0 0.0
    %1251 = vmatprep.subr.mxu0 0.0
    %1252 = vmatpush1.msra.mxu0 0.0
    %1253 = vmatprep.subr.mxu0 0.0
    %1254 = vmatpush1.msra.mxu0 0.0
    %1255 = vmatprep.subr.mxu0 0.0
    %1256 = vmatpush1.msra.mxu0 0.0
    %1257 = vmatprep.mubr.f32.mxu0 0.0
    %1258 = vmatmul.mubr.f32.gmra.mrb[0].mxu0 %v1188
    %v1259 = vpop.f32.mrb[0].mxu0
    %v1260 = vadd.f32 %v1184, %v1259
    %v1261 = vpop.f32.mrb[0].mxu0
    %1262 = vmatprep.mubr.f32.mxu0 0.0
    %1263 = vmatmul.mubr.f32.gmra.mrb[0].mxu0 %v1191
    %v1264 = vpop.f32.mrb[0].mxu0
    %v1265 = vadd.f32 %v1185, %v1264
    %v1266 = vpop.f32.mrb[0].mxu0
    %1267 = vdwg.mxu0
    %s1268 = scalar_lea.vmem [#allocation2], 160
    %v1269 = vld [vmem:[%s1268] sm:$0xff]
    %v1270 = vld [vmem:[%s1268 + $0x8] sm:$0xff]
    %v1271 = vld [vmem:[%s1268 + $0x10] sm:$0xff]
    %v1272 = vld [vmem:[%s1268 + $0x18] sm:$0xff]
    %s1273 = scalar_lea.vmem [#allocation2], 192
    %v1274 = vld [vmem:[%s1273] sm:$0xff]
    %v1275 = vld [vmem:[%s1273 + $0x8] sm:$0xff]
    %v1276 = vld [vmem:[%s1273 + $0x10] sm:$0xff]
    %v1277 = vld [vmem:[%s1273 + $0x18] sm:$0xff]
    %s1278 = scalar_lea.vmem [#allocation2], 224
    %v1279 = vld [vmem:[%s1278] sm:$0xff]
    %v1280 = vld [vmem:[%s1278 + $0x8] sm:$0xff]
    %v1281 = vld [vmem:[%s1278 + $0x10] sm:$0xff]
    %v1282 = vld [vmem:[%s1278 + $0x18] sm:$0xff]
    %s1283 = scalar_lea.vmem [#allocation2], 256
    %v1284 = vld [vmem:[%s1283] sm:$0xff]
    %v1285 = vld [vmem:[%s1283 + $0x8] sm:$0xff]
    %v1286 = vld [vmem:[%s1283 + $0x10] sm:$0xff]
    %v1287 = vld [vmem:[%s1283 + $0x18] sm:$0xff]
    %s1288 = scalar_lea.vmem [#allocation2], 288
    %v1289 = vld [vmem:[%s1288] sm:$0xff]
    %v1290 = vld [vmem:[%s1288 + $0x8] sm:$0xff]
    %v1291 = vld [vmem:[%s1288 + $0x10] sm:$0xff]
    %v1292 = vld [vmem:[%s1288 + $0x18] sm:$0xff]
    %s1293 = scalar_lea.vmem %s7, 7
    %v1294 = vld [vmem:[%s1293] sm:$0x1]
    %s1295 = scalar_lea.vmem %s7, 8
    %v1296 = vld [vmem:[%s1295] sm:$0x1]
    %s1297 = scalar_lea.vmem %s7, 9
    %v1298 = vld [vmem:[%s1297] sm:$0x1]
    %s1299 = scalar_lea.vmem %s7, 10
    %v1300 = vld [vmem:[%s1299] sm:$0x1]
    %s1301 = scalar_lea.vmem %s7, 11
    %v1302 = vld [vmem:[%s1301] sm:$0x1]
    %s1303 = scalar_lea.vmem %s7, 12
    %v1304 = vld [vmem:[%s1303] sm:$0x1]
    %v1306 = vsel %vm428, %v1260, 0
    %v1309 = vsel %vm428, %v1265, 0
    %1311 = vmatprep.subr.mxu0 0.0
    %1312 = vmatpush1.msra.mxu0 %v1269
    %1313 = vmatprep.subr.mxu0 0.0
    %1314 = vmatpush1.msra.mxu0 %v1270
    %1315 = vmatprep.subr.mxu0 0.0
    %1316 = vmatpush1.msra.mxu0 %v1271
    %1317 = vmatprep.subr.mxu0 0.0
    %1318 = vmatpush1.msra.mxu0 %v1272
    %1319 = vmatprep.subr.mxu0 0.0
    %1320 = vmatpush1.msra.mxu0 0.0
    %1321 = vmatprep.subr.mxu0 0.0
    %1322 = vmatpush1.msra.mxu0 0.0
    %1323 = vmatprep.subr.mxu0 0.0
    %1324 = vmatpush1.msra.mxu0 0.0
    %1325 = vmatprep.subr.mxu0 0.0
    %1326 = vmatpush1.msra.mxu0 0.0
    %1327 = vmatprep.subr.mxu0 0.0
    %1328 = vmatpush1.msra.mxu0 0.0
    %1329 = vmatprep.subr.mxu0 0.0
    %1330 = vmatpush1.msra.mxu0 0.0
    %1331 = vmatprep.subr.mxu0 0.0
    %1332 = vmatpush1.msra.mxu0 0.0
    %1333 = vmatprep.subr.mxu0 0.0
    %1334 = vmatpush1.msra.mxu0 0.0
    %1335 = vmatprep.subr.mxu0 0.0
    %1336 = vmatpush1.msra.mxu0 0.0
    %1337 = vmatprep.subr.mxu0 0.0
    %1338 = vmatpush1.msra.mxu0 0.0
    %1339 = vmatprep.subr.mxu0 0.0
    %1340 = vmatpush1.msra.mxu0 0.0
    %1341 = vmatprep.subr.mxu0 0.0
    %1342 = vmatpush1.msra.mxu0 0.0
    %1343 = vmatprep.subr.mxu0 0.0
    %1344 = vmatpush1.msra.mxu0 0.0
    %1345 = vmatprep.subr.mxu0 0.0
    %1346 = vmatpush1.msra.mxu0 0.0
    %1347 = vmatprep.subr.mxu0 0.0
    %1348 = vmatpush1.msra.mxu0 0.0
    %1349 = vmatprep.subr.mxu0 0.0
    %1350 = vmatpush1.msra.mxu0 0.0
    %1351 = vmatprep.subr.mxu0 0.0
    %1352 = vmatpush1.msra.mxu0 0.0
    %1353 = vmatprep.subr.mxu0 0.0
    %1354 = vmatpush1.msra.mxu0 0.0
    %1355 = vmatprep.subr.mxu0 0.0
    %1356 = vmatpush1.msra.mxu0 0.0
    %1357 = vmatprep.subr.mxu0 0.0
    %1358 = vmatpush1.msra.mxu0 0.0
    %1359 = vmatprep.subr.mxu0 0.0
    %1360 = vmatpush1.msra.mxu0 0.0
    %1361 = vmatprep.subr.mxu0 0.0
    %1362 = vmatpush1.msra.mxu0 0.0
    %1363 = vmatprep.subr.mxu0 0.0
    %1364 = vmatpush1.msra.mxu0 0.0
    %1365 = vmatprep.subr.mxu0 0.0
    %1366 = vmatpush1.msra.mxu0 0.0
    %1367 = vmatprep.subr.mxu0 0.0
    %1368 = vmatpush1.msra.mxu0 0.0
    %1369 = vmatprep.subr.mxu0 0.0
    %1370 = vmatpush1.msra.mxu0 0.0
    %1371 = vmatprep.subr.mxu0 0.0
    %1372 = vmatpush1.msra.mxu0 0.0
    %1373 = vmatprep.subr.mxu0 0.0
    %1374 = vmatpush1.msra.mxu0 0.0
    %1375 = vmatprep.mubr.f32.mxu0 0.0
    %1376 = vmatmul.mubr.f32.gmra.mrb[0].mxu0 %v1306
    %v1377 = vpop.f32.mrb[0].mxu0
    %v1378 = vadd.f32 0.0, %v1377
    %v1379 = vpop.f32.mrb[0].mxu0
    %1380 = vmatprep.mubr.f32.mxu0 0.0
    %1381 = vmatmul.mubr.f32.gmra.mrb[0].mxu0 %v1309
    %v1382 = vpop.f32.mrb[0].mxu0
    %v1383 = vadd.f32 0.0, %v1382
    %v1384 = vpop.f32.mrb[0].mxu0
    %1385 = vdwg.mxu0
    %1386 = vmatprep.subr.mxu0 0.0
    %1387 = vmatpush1.msra.mxu0 %v1274
    %1388 = vmatprep.subr.mxu0 0.0
    %1389 = vmatpush1.msra.mxu0 %v1275
    %1390 = vmatprep.subr.mxu0 0.0
    %1391 = vmatpush1.msra.mxu0 %v1276
    %1392 = vmatprep.subr.mxu0 0.0
    %1393 = vmatpush1.msra.mxu0 %v1277
    %1394 = vmatprep.subr.mxu0 0.0
    %1395 = vmatpush1.msra.mxu0 0.0
    %1396 = vmatprep.subr.mxu0 0.0
    %1397 = vmatpush1.msra.mxu0 0.0
    %1398 = vmatprep.subr.mxu0 0.0
    %1399 = vmatpush1.msra.mxu0 0.0
    %1400 = vmatprep.subr.mxu0 0.0
    %1401 = vmatpush1.msra.mxu0 0.0
    %1402 = vmatprep.subr.mxu0 0.0
    %1403 = vmatpush1.msra.mxu0 0.0
    %1404 = vmatprep.subr.mxu0 0.0
    %1405 = vmatpush1.msra.mxu0 0.0
    %1406 = vmatprep.subr.mxu0 0.0
    %1407 = vmatpush1.msra.mxu0 0.0
    %1408 = vmatprep.subr.mxu0 0.0
    %1409 = vmatpush1.msra.mxu0 0.0
    %1410 = vmatprep.subr.mxu0 0.0
    %1411 = vmatpush1.msra.mxu0 0.0
    %1412 = vmatprep.subr.mxu0 0.0
    %1413 = vmatpush1.msra.mxu0 0.0
    %1414 = vmatprep.subr.mxu0 0.0
    %1415 = vmatpush1.msra.mxu0 0.0
    %1416 = vmatprep.subr.mxu0 0.0
    %1417 = vmatpush1.msra.mxu0 0.0
    %1418 = vmatprep.subr.mxu0 0.0
    %1419 = vmatpush1.msra.mxu0 0.0
    %1420 = vmatprep.subr.mxu0 0.0
    %1421 = vmatpush1.msra.mxu0 0.0
    %1422 = vmatprep.subr.mxu0 0.0
    %1423 = vmatpush1.msra.mxu0 0.0
    %1424 = vmatprep.subr.mxu0 0.0
    %1425 = vmatpush1.msra.mxu0 0.0
    %1426 = vmatprep.subr.mxu0 0.0
    %1427 = vmatpush1.msra.mxu0 0.0
    %1428 = vmatprep.subr.mxu0 0.0
    %1429 = vmatpush1.msra.mxu0 0.0
    %1430 = vmatprep.subr.mxu0 0.0
    %1431 = vmatpush1.msra.mxu0 0.0
    %1432 = vmatprep.subr.mxu0 0.0
    %1433 = vmatpush1.msra.mxu0 0.0
    %1434 = vmatprep.subr.mxu0 0.0
    %1435 = vmatpush1.msra.mxu0 0.0
    %1436 = vmatprep.subr.mxu0 0.0
    %1437 = vmatpush1.msra.mxu0 0.0
    %1438 = vmatprep.subr.mxu0 0.0
    %1439 = vmatpush1.msra.mxu0 0.0
    %1440 = vmatprep.subr.mxu0 0.0
    %1441 = vmatpush1.msra.mxu0 0.0
    %1442 = vmatprep.subr.mxu0 0.0
    %1443 = vmatpush1.msra.mxu0 0.0
    %1444 = vmatprep.subr.mxu0 0.0
    %1445 = vmatpush1.msra.mxu0 0.0
    %1446 = vmatprep.subr.mxu0 0.0
    %1447 = vmatpush1.msra.mxu0 0.0
    %1448 = vmatprep.subr.mxu0 0.0
    %1449 = vmatpush1.msra.mxu0 0.0
    %1450 = vmatprep.mubr.f32.mxu0 0.0
    %1451 = vmatmul.mubr.f32.gmra.mrb[0].mxu0 %v1306
    %v1452 = vpop.f32.mrb[0].mxu0
    %v1453 = vadd.f32 0.0, %v1452
    %v1454 = vpop.f32.mrb[0].mxu0
    %1455 = vmatprep.mubr.f32.mxu0 0.0
    %1456 = vmatmul.mubr.f32.gmra.mrb[0].mxu0 %v1309
    %v1457 = vpop.f32.mrb[0].mxu0
    %v1458 = vadd.f32 0.0, %v1457
    %v1459 = vpop.f32.mrb[0].mxu0
    %1460 = vdwg.mxu0
    %1461 = vmatprep.subr.mxu0 0.0
    %1462 = vmatpush1.msra.mxu0 %v1453
    %1463 = vmatprep.subr.mxu0 0.0
    %1464 = vmatpush1.msra.mxu0 %v1458
    %1465 = vmatprep.subr.mxu0 0.0
    %1466 = vmatpush1.msra.mxu0 0.0
    %1467 = vmatprep.subr.mxu0 0.0
    %1468 = vmatpush1.msra.mxu0 0.0
    %1469 = vmatprep.subr.mxu0 0.0
    %1470 = vmatpush1.msra.mxu0 0.0
    %1471 = vmatprep.subr.mxu0 0.0
    %1472 = vmatpush1.msra.mxu0 0.0
    %1473 = vmatprep.subr.mxu0 0.0
    %1474 = vmatpush1.msra.mxu0 0.0
    %1475 = vmatprep.subr.mxu0 0.0
    %1476 = vmatpush1.msra.mxu0 0.0
    %1477 = vmatprep.subr.mxu0 0.0
    %1478 = vmatpush1.msra.mxu0 0.0
    %1479 = vmatprep.subr.mxu0 0.0
    %1480 = vmatpush1.msra.mxu0 0.0
    %1481 = vmatprep.subr.mxu0 0.0
    %1482 = vmatpush1.msra.mxu0 0.0
    %1483 = vmatprep.subr.mxu0 0.0
    %1484 = vmatpush1.msra.mxu0 0.0
    %1485 = vmatprep.subr.mxu0 0.0
    %1486 = vmatpush1.msra.mxu0 0.0
    %1487 = vmatprep.subr.mxu0 0.0
    %1488 = vmatpush1.msra.mxu0 0.0
    %1489 = vmatprep.subr.mxu0 0.0
    %1490 = vmatpush1.msra.mxu0 0.0
    %1491 = vmatprep.subr.mxu0 0.0
    %1492 = vmatpush1.msra.mxu0 0.0
    %1493 = vmatprep.subr.mxu0 0.0
    %1494 = vmatpush1.msra.mxu0 0.0
    %1495 = vmatprep.subr.mxu0 0.0
    %1496 = vmatpush1.msra.mxu0 0.0
    %1497 = vmatprep.subr.mxu0 0.0
    %1498 = vmatpush1.msra.mxu0 0.0
    %1499 = vmatprep.subr.mxu0 0.0
    %1500 = vmatpush1.msra.mxu0 0.0
    %1501 = vmatprep.subr.mxu0 0.0
    %1502 = vmatpush1.msra.mxu0 0.0
    %1503 = vmatprep.subr.mxu0 0.0
    %1504 = vmatpush1.msra.mxu0 0.0
    %1505 = vmatprep.subr.mxu0 0.0
    %1506 = vmatpush1.msra.mxu0 0.0
    %1507 = vmatprep.subr.mxu0 0.0
    %1508 = vmatpush1.msra.mxu0 0.0
    %1509 = vmatprep.subr.mxu0 0.0
    %1510 = vmatpush1.msra.mxu0 0.0
    %1511 = vmatprep.subr.mxu0 0.0
    %1512 = vmatpush1.msra.mxu0 0.0
    %1513 = vmatprep.subr.mxu0 0.0
    %1514 = vmatpush1.msra.mxu0 0.0
    %1515 = vmatprep.subr.mxu0 0.0
    %1516 = vmatpush1.msra.mxu0 0.0
    %1517 = vmatprep.subr.mxu0 0.0
    %1518 = vmatpush1.msra.mxu0 0.0
    %1519 = vmatprep.subr.mxu0 0.0
    %1520 = vmatpush1.msra.mxu0 0.0
    %1521 = vmatprep.subr.mxu0 0.0
    %1522 = vmatpush1.msra.mxu0 0.0
    %1523 = vmatprep.subr.mxu0 0.0
    %1524 = vmatpush1.msra.mxu0 0.0
    %1525 = vmatprep.mubr.f32.mxu0 0.0
    %1526 = vmatmul.mubr.f32.gmra.mrb[0].mxu0 %v586
    %v1527 = vpop.f32.mrb[0].mxu0
    %v1528 = vadd.f32 0.0, %v1527
    %v1529 = vpop.f32.mrb[0].mxu0
    %1530 = vmatprep.mubr.f32.mxu0 0.0
    %1531 = vmatmul.mubr.f32.gmra.mrb[0].mxu0 %v589
    %v1532 = vpop.f32.mrb[0].mxu0
    %v1533 = vadd.f32 0.0, %v1532
    %v1534 = vpop.f32.mrb[0].mxu0
    %1535 = vmatprep.mubr.f32.mxu0 0.0
    %1536 = vmatmul.mubr.f32.gmra.mrb[0].mxu0 %v592
    %v1537 = vpop.f32.mrb[0].mxu0
    %v1538 = vadd.f32 0.0, %v1537
    %v1539 = vpop.f32.mrb[0].mxu0
    %1540 = vmatprep.mubr.f32.mxu0 0.0
    %1541 = vmatmul.mubr.f32.gmra.mrb[0].mxu0 %v595
    %v1542 = vpop.f32.mrb[0].mxu0
    %v1543 = vadd.f32 0.0, %v1542
    %v1544 = vpop.f32.mrb[0].mxu0
    %1545 = vmatprep.mubr.f32.mxu0 0.0
    %1546 = vmatmul.mubr.f32.gmra.mrb[0].mxu0 %v598
    %v1547 = vpop.f32.mrb[0].mxu0
    %v1548 = vadd.f32 0.0, %v1547
    %v1549 = vpop.f32.mrb[0].mxu0
    %1550 = vmatprep.mubr.f32.mxu0 0.0
    %1551 = vmatmul.mubr.f32.gmra.mrb[0].mxu0 %v601
    %v1552 = vpop.f32.mrb[0].mxu0
    %v1553 = vadd.f32 0.0, %v1552
    %v1554 = vpop.f32.mrb[0].mxu0
    %1555 = vdwg.mxu0
    %1556 = vmatprep.subr.mxu0 0.0
    %1557 = vmatpush1.msra.mxu0 %v1378
    %1558 = vmatprep.subr.mxu0 0.0
    %1559 = vmatpush1.msra.mxu0 %v1383
    %1560 = vmatprep.subr.mxu0 0.0
    %1561 = vmatpush1.msra.mxu0 0.0
    %1562 = vmatprep.subr.mxu0 0.0
    %1563 = vmatpush1.msra.mxu0 0.0
    %1564 = vmatprep.subr.mxu0 0.0
    %1565 = vmatpush1.msra.mxu0 0.0
    %1566 = vmatprep.subr.mxu0 0.0
    %1567 = vmatpush1.msra.mxu0 0.0
    %1568 = vmatprep.subr.mxu0 0.0
    %1569 = vmatpush1.msra.mxu0 0.0
    %1570 = vmatprep.subr.mxu0 0.0
    %1571 = vmatpush1.msra.mxu0 0.0
    %1572 = vmatprep.subr.mxu0 0.0
    %1573 = vmatpush1.msra.mxu0 0.0
    %1574 = vmatprep.subr.mxu0 0.0
    %1575 = vmatpush1.msra.mxu0 0.0
    %1576 = vmatprep.subr.mxu0 0.0
    %1577 = vmatpush1.msra.mxu0 0.0
    %1578 = vmatprep.subr.mxu0 0.0
    %1579 = vmatpush1.msra.mxu0 0.0
    %1580 = vmatprep.subr.mxu0 0.0
    %1581 = vmatpush1.msra.mxu0 0.0
    %1582 = vmatprep.subr.mxu0 0.0
    %1583 = vmatpush1.msra.mxu0 0.0
    %1584 = vmatprep.subr.mxu0 0.0
    %1585 = vmatpush1.msra.mxu0 0.0
    %1586 = vmatprep.subr.mxu0 0.0
    %1587 = vmatpush1.msra.mxu0 0.0
    %1588 = vmatprep.subr.mxu0 0.0
    %1589 = vmatpush1.msra.mxu0 0.0
    %1590 = vmatprep.subr.mxu0 0.0
    %1591 = vmatpush1.msra.mxu0 0.0
    %1592 = vmatprep.subr.mxu0 0.0
    %1593 = vmatpush1.msra.mxu0 0.0
    %1594 = vmatprep.subr.mxu0 0.0
    %1595 = vmatpush1.msra.mxu0 0.0
    %1596 = vmatprep.subr.mxu0 0.0
    %1597 = vmatpush1.msra.mxu0 0.0
    %1598 = vmatprep.subr.mxu0 0.0
    %1599 = vmatpush1.msra.mxu0 0.0
    %1600 = vmatprep.subr.mxu0 0.0
    %1601 = vmatpush1.msra.mxu0 0.0
    %1602 = vmatprep.subr.mxu0 0.0
    %1603 = vmatpush1.msra.mxu0 0.0
    %1604 = vmatprep.subr.mxu0 0.0
    %1605 = vmatpush1.msra.mxu0 0.0
    %1606 = vmatprep.subr.mxu0 0.0
    %1607 = vmatpush1.msra.mxu0 0.0
    %1608 = vmatprep.subr.mxu0 0.0
    %1609 = vmatpush1.msra.mxu0 0.0
    %1610 = vmatprep.subr.mxu0 0.0
    %1611 = vmatpush1.msra.mxu0 0.0
    %1612 = vmatprep.subr.mxu0 0.0
    %1613 = vmatpush1.msra.mxu0 0.0
    %1614 = vmatprep.subr.mxu0 0.0
    %1615 = vmatpush1.msra.mxu0 0.0
    %1616 = vmatprep.subr.mxu0 0.0
    %1617 = vmatpush1.msra.mxu0 0.0
    %1618 = vmatprep.subr.mxu0 0.0
    %1619 = vmatpush1.msra.mxu0 0.0
    %1620 = vmatprep.mubr.f32.mxu0 0.0
    %1621 = vmatmul.mubr.f32.gmra.mrb[0].mxu0 %v699
    %v1622 = vpop.f32.mrb[0].mxu0
    %v1623 = vadd.f32 %v1528, %v1622
    %v1624 = vpop.f32.mrb[0].mxu0
    %1625 = vmatprep.mubr.f32.mxu0 0.0
    %1626 = vmatmul.mubr.f32.gmra.mrb[0].mxu0 %v702
    %v1627 = vpop.f32.mrb[0].mxu0
    %v1628 = vadd.f32 %v1533, %v1627
    %v1629 = vpop.f32.mrb[0].mxu0
    %1630 = vmatprep.mubr.f32.mxu0 0.0
    %1631 = vmatmul.mubr.f32.gmra.mrb[0].mxu0 %v705
    %v1632 = vpop.f32.mrb[0].mxu0
    %v1633 = vadd.f32 %v1538, %v1632
    %v1634 = vpop.f32.mrb[0].mxu0
    %1635 = vmatprep.mubr.f32.mxu0 0.0
    %1636 = vmatmul.mubr.f32.gmra.mrb[0].mxu0 %v708
    %v1637 = vpop.f32.mrb[0].mxu0
    %v1638 = vadd.f32 %v1543, %v1637
    %v1639 = vpop.f32.mrb[0].mxu0
    %1640 = vmatprep.mubr.f32.mxu0 0.0
    %1641 = vmatmul.mubr.f32.gmra.mrb[0].mxu0 %v711
    %v1642 = vpop.f32.mrb[0].mxu0
    %v1643 = vadd.f32 %v1548, %v1642
    %v1644 = vpop.f32.mrb[0].mxu0
    %1645 = vmatprep.mubr.f32.mxu0 0.0
    %1646 = vmatmul.mubr.f32.gmra.mrb[0].mxu0 %v714
    %v1647 = vpop.f32.mrb[0].mxu0
    %v1648 = vadd.f32 %v1553, %v1647
    %v1649 = vpop.f32.mrb[0].mxu0
    %1650 = vdwg.mxu0
    %v1652 = vlaneseq
    %v1653 = vshrl.u32 %v1652, 7
    %v1654 = vsub.s32 0, %v1653
    %v1655 = vrot.slane %v1294, %v1654
    %v1657 = vadd.f32 %v1623, %v1655
    %v1658 = vadd.f32 %v1628, %v1655
    %v1659 = vadd.f32 %v1633, %v1655
    %v1660 = vadd.f32 %v1638, %v1655
    %v1661 = vadd.f32 %v1643, %v1655
    %v1662 = vadd.f32 %v1648, %v1655
    %v1663 = vmax.f32 %v1657, 0.0
    %v1664 = vmax.f32 %v1658, 0.0
    %v1665 = vmax.f32 %v1659, 0.0
    %v1666 = vmax.f32 %v1660, 0.0
    %v1667 = vmax.f32 %v1661, 0.0
    %v1668 = vmax.f32 %v1662, 0.0
    %v1670 = vlaneseq
    %v1671 = vshrl.u32 %v1670, 7
    %v1672 = vsub.s32 0, %v1671
    %v1673 = vrot.slane %v1296, %v1672
    %v1676 = vsel %vm428, %v1663, 0
    %v1679 = vsel %vm428, %v1664, 0
    %v1682 = vsel %vm428, %v1665, 0
    %v1685 = vsel %vm428, %v1666, 0
    %v1688 = vsel %vm428, %v1667, 0
    %v1691 = vsel %vm428, %v1668, 0
    %1693 = vmatprep.subr.mxu0 0.0
    %1694 = vmatpush1.msra.mxu0 %v1279
    %1695 = vmatprep.subr.mxu0 0.0
    %1696 = vmatpush1.msra.mxu0 %v1280
    %1697 = vmatprep.subr.mxu0 0.0
    %1698 = vmatpush1.msra.mxu0 %v1281
    %1699 = vmatprep.subr.mxu0 0.0
    %1700 = vmatpush1.msra.mxu0 %v1282
    %1701 = vmatprep.subr.mxu0 0.0
    %1702 = vmatpush1.msra.mxu0 0.0
    %1703 = vmatprep.subr.mxu0 0.0
    %1704 = vmatpush1.msra.mxu0 0.0
    %1705 = vmatprep.subr.mxu0 0.0
    %1706 = vmatpush1.msra.mxu0 0.0
    %1707 = vmatprep.subr.mxu0 0.0
    %1708 = vmatpush1.msra.mxu0 0.0
    %1709 = vmatprep.subr.mxu0 0.0
    %1710 = vmatpush1.msra.mxu0 0.0
    %1711 = vmatprep.subr.mxu0 0.0
    %1712 = vmatpush1.msra.mxu0 0.0
    %1713 = vmatprep.subr.mxu0 0.0
    %1714 = vmatpush1.msra.mxu0 0.0
    %1715 = vmatprep.subr.mxu0 0.0
    %1716 = vmatpush1.msra.mxu0 0.0
    %1717 = vmatprep.subr.mxu0 0.0
    %1718 = vmatpush1.msra.mxu0 0.0
    %1719 = vmatprep.subr.mxu0 0.0
    %1720 = vmatpush1.msra.mxu0 0.0
    %1721 = vmatprep.subr.mxu0 0.0
    %1722 = vmatpush1.msra.mxu0 0.0
    %1723 = vmatprep.subr.mxu0 0.0
    %1724 = vmatpush1.msra.mxu0 0.0
    %1725 = vmatprep.subr.mxu0 0.0
    %1726 = vmatpush1.msra.mxu0 0.0
    %1727 = vmatprep.subr.mxu0 0.0
    %1728 = vmatpush1.msra.mxu0 0.0
    %1729 = vmatprep.subr.mxu0 0.0
    %1730 = vmatpush1.msra.mxu0 0.0
    %1731 = vmatprep.subr.mxu0 0.0
    %1732 = vmatpush1.msra.mxu0 0.0
    %1733 = vmatprep.subr.mxu0 0.0
    %1734 = vmatpush1.msra.mxu0 0.0
    %1735 = vmatprep.subr.mxu0 0.0
    %1736 = vmatpush1.msra.mxu0 0.0
    %1737 = vmatprep.subr.mxu0 0.0
    %1738 = vmatpush1.msra.mxu0 0.0
    %1739 = vmatprep.subr.mxu0 0.0
    %1740 = vmatpush1.msra.mxu0 0.0
    %1741 = vmatprep.subr.mxu0 0.0
    %1742 = vmatpush1.msra.mxu0 0.0
    %1743 = vmatprep.subr.mxu0 0.0
    %1744 = vmatpush1.msra.mxu0 0.0
    %1745 = vmatprep.subr.mxu0 0.0
    %1746 = vmatpush1.msra.mxu0 0.0
    %1747 = vmatprep.subr.mxu0 0.0
    %1748 = vmatpush1.msra.mxu0 0.0
    %1749 = vmatprep.subr.mxu0 0.0
    %1750 = vmatpush1.msra.mxu0 0.0
    %1751 = vmatprep.subr.mxu0 0.0
    %1752 = vmatpush1.msra.mxu0 0.0
    %1753 = vmatprep.subr.mxu0 0.0
    %1754 = vmatpush1.msra.mxu0 0.0
    %1755 = vmatprep.subr.mxu0 0.0
    %1756 = vmatpush1.msra.mxu0 0.0
    %1757 = vmatprep.mubr.f32.mxu0 0.0
    %1758 = vmatmul.mubr.f32.gmra.mrb[0].mxu0 %v1676
    %v1759 = vpop.f32.mrb[0].mxu0
    %v1760 = vadd.f32 %v1673, %v1759
    %v1761 = vpop.f32.mrb[0].mxu0
    %1762 = vmatprep.mubr.f32.mxu0 0.0
    %1763 = vmatmul.mubr.f32.gmra.mrb[0].mxu0 %v1679
    %v1764 = vpop.f32.mrb[0].mxu0
    %v1765 = vadd.f32 %v1673, %v1764
    %v1766 = vpop.f32.mrb[0].mxu0
    %1767 = vmatprep.mubr.f32.mxu0 0.0
    %1768 = vmatmul.mubr.f32.gmra.mrb[0].mxu0 %v1682
    %v1769 = vpop.f32.mrb[0].mxu0
    %v1770 = vadd.f32 %v1673, %v1769
    %v1771 = vpop.f32.mrb[0].mxu0
    %1772 = vmatprep.mubr.f32.mxu0 0.0
    %1773 = vmatmul.mubr.f32.gmra.mrb[0].mxu0 %v1685
    %v1774 = vpop.f32.mrb[0].mxu0
    %v1775 = vadd.f32 %v1673, %v1774
    %v1776 = vpop.f32.mrb[0].mxu0
    %1777 = vmatprep.mubr.f32.mxu0 0.0
    %1778 = vmatmul.mubr.f32.gmra.mrb[0].mxu0 %v1688
    %v1779 = vpop.f32.mrb[0].mxu0
    %v1780 = vadd.f32 %v1673, %v1779
    %v1781 = vpop.f32.mrb[0].mxu0
    %1782 = vmatprep.mubr.f32.mxu0 0.0
    %1783 = vmatmul.mubr.f32.gmra.mrb[0].mxu0 %v1691
    %v1784 = vpop.f32.mrb[0].mxu0
    %v1785 = vadd.f32 %v1673, %v1784
    %v1786 = vpop.f32.mrb[0].mxu0
    %1787 = vdwg.mxu0
    %v1788 = vmax.f32 %v1760, 0.0
    %v1789 = vmax.f32 %v1765, 0.0
    %v1790 = vmax.f32 %v1770, 0.0
    %v1791 = vmax.f32 %v1775, 0.0
    %v1792 = vmax.f32 %v1780, 0.0
    %v1793 = vmax.f32 %v1785, 0.0
    %v1795 = vlaneseq
    %v1796 = vshrl.u32 %v1795, 7
    %v1797 = vsub.s32 0, %v1796
    %v1798 = vrot.slane %v1298, %v1797
    %v1801 = vsel %vm428, %v1788, 0
    %v1804 = vsel %vm428, %v1789, 0
    %v1807 = vsel %vm428, %v1790, 0
    %v1810 = vsel %vm428, %v1791, 0
    %v1813 = vsel %vm428, %v1792, 0
    %v1816 = vsel %vm428, %v1793, 0
    %1818 = vmatprep.subr.mxu0 0.0
    %1819 = vmatpush1.msra.mxu0 %v1284
    %1820 = vmatprep.subr.mxu0 0.0
    %1821 = vmatpush1.msra.mxu0 %v1285
    %1822 = vmatprep.subr.mxu0 0.0
    %1823 = vmatpush1.msra.mxu0 %v1286
    %1824 = vmatprep.subr.mxu0 0.0
    %1825 = vmatpush1.msra.mxu0 %v1287
    %1826 = vmatprep.subr.mxu0 0.0
    %1827 = vmatpush1.msra.mxu0 0.0
    %1828 = vmatprep.subr.mxu0 0.0
    %1829 = vmatpush1.msra.mxu0 0.0
    %1830 = vmatprep.subr.mxu0 0.0
    %1831 = vmatpush1.msra.mxu0 0.0
    %1832 = vmatprep.subr.mxu0 0.0
    %1833 = vmatpush1.msra.mxu0 0.0
    %1834 = vmatprep.subr.mxu0 0.0
    %1835 = vmatpush1.msra.mxu0 0.0
    %1836 = vmatprep.subr.mxu0 0.0
    %1837 = vmatpush1.msra.mxu0 0.0
    %1838 = vmatprep.subr.mxu0 0.0
    %1839 = vmatpush1.msra.mxu0 0.0
    %1840 = vmatprep.subr.mxu0 0.0
    %1841 = vmatpush1.msra.mxu0 0.0
    %1842 = vmatprep.subr.mxu0 0.0
    %1843 = vmatpush1.msra.mxu0 0.0
    %1844 = vmatprep.subr.mxu0 0.0
    %1845 = vmatpush1.msra.mxu0 0.0
    %1846 = vmatprep.subr.mxu0 0.0
    %1847 = vmatpush1.msra.mxu0 0.0
    %1848 = vmatprep.subr.mxu0 0.0
    %1849 = vmatpush1.msra.mxu0 0.0
    %1850 = vmatprep.subr.mxu0 0.0
    %1851 = vmatpush1.msra.mxu0 0.0
    %1852 = vmatprep.subr.mxu0 0.0
    %1853 = vmatpush1.msra.mxu0 0.0
    %1854 = vmatprep.subr.mxu0 0.0
    %1855 = vmatpush1.msra.mxu0 0.0
    %1856 = vmatprep.subr.mxu0 0.0
    %1857 = vmatpush1.msra.mxu0 0.0
    %1858 = vmatprep.subr.mxu0 0.0
    %1859 = vmatpush1.msra.mxu0 0.0
    %1860 = vmatprep.subr.mxu0 0.0
    %1861 = vmatpush1.msra.mxu0 0.0
    %1862 = vmatprep.subr.mxu0 0.0
    %1863 = vmatpush1.msra.mxu0 0.0
    %1864 = vmatprep.subr.mxu0 0.0
    %1865 = vmatpush1.msra.mxu0 0.0
    %1866 = vmatprep.subr.mxu0 0.0
    %1867 = vmatpush1.msra.mxu0 0.0
    %1868 = vmatprep.subr.mxu0 0.0
    %1869 = vmatpush1.msra.mxu0 0.0
    %1870 = vmatprep.subr.mxu0 0.0
    %1871 = vmatpush1.msra.mxu0 0.0
    %1872 = vmatprep.subr.mxu0 0.0
    %1873 = vmatpush1.msra.mxu0 0.0
    %1874 = vmatprep.subr.mxu0 0.0
    %1875 = vmatpush1.msra.mxu0 0.0
    %1876 = vmatprep.subr.mxu0 0.0
    %1877 = vmatpush1.msra.mxu0 0.0
    %1878 = vmatprep.subr.mxu0 0.0
    %1879 = vmatpush1.msra.mxu0 0.0
    %1880 = vmatprep.subr.mxu0 0.0
    %1881 = vmatpush1.msra.mxu0 0.0
    %1882 = vmatprep.mubr.f32.mxu0 0.0
    %1883 = vmatmul.mubr.f32.gmra.mrb[0].mxu0 %v1801
    %v1884 = vpop.f32.mrb[0].mxu0
    %v1885 = vadd.f32 %v1798, %v1884
    %v1886 = vpop.f32.mrb[0].mxu0
    %1887 = vmatprep.mubr.f32.mxu0 0.0
    %1888 = vmatmul.mubr.f32.gmra.mrb[0].mxu0 %v1804
    %v1889 = vpop.f32.mrb[0].mxu0
    %v1890 = vadd.f32 %v1798, %v1889
    %v1891 = vpop.f32.mrb[0].mxu0
    %1892 = vmatprep.mubr.f32.mxu0 0.0
    %1893 = vmatmul.mubr.f32.gmra.mrb[0].mxu0 %v1807
    %v1894 = vpop.f32.mrb[0].mxu0
    %v1895 = vadd.f32 %v1798, %v1894
    %v1896 = vpop.f32.mrb[0].mxu0
    %1897 = vmatprep.mubr.f32.mxu0 0.0
    %1898 = vmatmul.mubr.f32.gmra.mrb[0].mxu0 %v1810
    %v1899 = vpop.f32.mrb[0].mxu0
    %v1900 = vadd.f32 %v1798, %v1899
    %v1901 = vpop.f32.mrb[0].mxu0
    %1902 = vmatprep.mubr.f32.mxu0 0.0
    %1903 = vmatmul.mubr.f32.gmra.mrb[0].mxu0 %v1813
    %v1904 = vpop.f32.mrb[0].mxu0
    %v1905 = vadd.f32 %v1798, %v1904
    %v1906 = vpop.f32.mrb[0].mxu0
    %1907 = vmatprep.mubr.f32.mxu0 0.0
    %1908 = vmatmul.mubr.f32.gmra.mrb[0].mxu0 %v1816
    %v1909 = vpop.f32.mrb[0].mxu0
    %v1910 = vadd.f32 %v1798, %v1909
    %v1911 = vpop.f32.mrb[0].mxu0
    %1912 = vdwg.mxu0
    %v1913 = vmax.f32 %v1885, 0.0
    %v1914 = vmax.f32 %v1890, 0.0
    %v1915 = vmax.f32 %v1895, 0.0
    %v1916 = vmax.f32 %v1900, 0.0
    %v1917 = vmax.f32 %v1905, 0.0
    %v1918 = vmax.f32 %v1910, 0.0
    %v1920 = vlaneseq
    %v1921 = vshrl.u32 %v1920, 7
    %v1922 = vsub.s32 0, %v1921
    %v1923 = vrot.slane %v1300, %v1922
    %v1925 = vmul.f32 %v1913, %v1923
    %v1926 = vmul.f32 %v1914, %v1923
    %v1927 = vmul.f32 %v1915, %v1923
    %v1928 = vmul.f32 %v1916, %v1923
    %v1929 = vmul.f32 %v1917, %v1923
    %v1930 = vmul.f32 %v1918, %v1923
    %v1932 = vlaneseq
    %v1933 = vshrl.u32 %v1932, 7
    %v1934 = vsub.s32 0, %v1933
    %v1935 = vrot.slane %v1302, %v1934
    %v1937 = vadd.f32 %v1925, %v1935
    %v1938 = vadd.f32 %v1926, %v1935
    %v1939 = vadd.f32 %v1927, %v1935
    %v1940 = vadd.f32 %v1928, %v1935
    %v1941 = vadd.f32 %v1929, %v1935
    %v1942 = vadd.f32 %v1930, %v1935
    %v1944 = vlaneseq
    %v1945 = vshrl.u32 %v1944, 7
    %v1946 = vsub.s32 0, %v1945
    %v1947 = vrot.slane %v1304, %v1946
    %1949 = vmatprep.subr.mxu0 0.0
    %1950 = vmatpush1.msra.mxu0 %v1289
    %1951 = vmatprep.subr.mxu0 0.0
    %1952 = vmatpush1.msra.mxu0 %v1290
    %1953 = vmatprep.subr.mxu0 0.0
    %1954 = vmatpush1.msra.mxu0 %v1291
    %1955 = vmatprep.subr.mxu0 0.0
    %1956 = vmatpush1.msra.mxu0 %v1292
    %1957 = vmatprep.subr.mxu0 0.0
    %1958 = vmatpush1.msra.mxu0 0.0
    %1959 = vmatprep.subr.mxu0 0.0
    %1960 = vmatpush1.msra.mxu0 0.0
    %1961 = vmatprep.subr.mxu0 0.0
    %1962 = vmatpush1.msra.mxu0 0.0
    %1963 = vmatprep.subr.mxu0 0.0
    %1964 = vmatpush1.msra.mxu0 0.0
    %1965 = vmatprep.subr.mxu0 0.0
    %1966 = vmatpush1.msra.mxu0 0.0
    %1967 = vmatprep.subr.mxu0 0.0
    %1968 = vmatpush1.msra.mxu0 0.0
    %1969 = vmatprep.subr.mxu0 0.0
    %1970 = vmatpush1.msra.mxu0 0.0
    %1971 = vmatprep.subr.mxu0 0.0
    %1972 = vmatpush1.msra.mxu0 0.0
    %1973 = vmatprep.subr.mxu0 0.0
    %1974 = vmatpush1.msra.mxu0 0.0
    %1975 = vmatprep.subr.mxu0 0.0
    %1976 = vmatpush1.msra.mxu0 0.0
    %1977 = vmatprep.subr.mxu0 0.0
    %1978 = vmatpush1.msra.mxu0 0.0
    %1979 = vmatprep.subr.mxu0 0.0
    %1980 = vmatpush1.msra.mxu0 0.0
    %1981 = vmatprep.subr.mxu0 0.0
    %1982 = vmatpush1.msra.mxu0 0.0
    %1983 = vmatprep.subr.mxu0 0.0
    %1984 = vmatpush1.msra.mxu0 0.0
    %1985 = vmatprep.subr.mxu0 0.0
    %1986 = vmatpush1.msra.mxu0 0.0
    %1987 = vmatprep.subr.mxu0 0.0
    %1988 = vmatpush1.msra.mxu0 0.0
    %1989 = vmatprep.subr.mxu0 0.0
    %1990 = vmatpush1.msra.mxu0 0.0
    %1991 = vmatprep.subr.mxu0 0.0
    %1992 = vmatpush1.msra.mxu0 0.0
    %1993 = vmatprep.subr.mxu0 0.0
    %1994 = vmatpush1.msra.mxu0 0.0
    %1995 = vmatprep.subr.mxu0 0.0
    %1996 = vmatpush1.msra.mxu0 0.0
    %1997 = vmatprep.subr.mxu0 0.0
    %1998 = vmatpush1.msra.mxu0 0.0
    %1999 = vmatprep.subr.mxu0 0.0
    %2000 = vmatpush1.msra.mxu0 0.0
    %2001 = vmatprep.subr.mxu0 0.0
    %2002 = vmatpush1.msra.mxu0 0.0
    %2003 = vmatprep.subr.mxu0 0.0
    %2004 = vmatpush1.msra.mxu0 0.0
    %2005 = vmatprep.subr.mxu0 0.0
    %2006 = vmatpush1.msra.mxu0 0.0
    %2007 = vmatprep.subr.mxu0 0.0
    %2008 = vmatpush1.msra.mxu0 0.0
    %2009 = vmatprep.subr.mxu0 0.0
    %2010 = vmatpush1.msra.mxu0 0.0
    %2011 = vmatprep.subr.mxu0 0.0
    %2012 = vmatpush1.msra.mxu0 0.0
    %2013 = vmatprep.mubr.f32.mxu0 0.0
    %2014 = vmatmul.mubr.f32.gmra.mrb[0].mxu0 %v1306
    %v2015 = vpop.f32.mrb[0].mxu0
    %v2016 = vadd.f32 %v1947, %v2015
    %v2017 = vpop.f32.mrb[0].mxu0
    %2018 = vmatprep.mubr.f32.mxu0 0.0
    %2019 = vmatmul.mubr.f32.gmra.mrb[0].mxu0 %v1309
    %v2020 = vpop.f32.mrb[0].mxu0
    %v2021 = vadd.f32 %v1947, %v2020
    %v2022 = vpop.f32.mrb[0].mxu0
    %2023 = vdwg.mxu0
    %v2024 = vmax.f32 %v2016, 0.0
    %v2025 = vmax.f32 %v2021, 0.0
    %2026 = vmatprep.subr.mxu0 0.0
    %2027 = vmatpush1.msra.mxu0 %v1937
    %2028 = vmatprep.subr.mxu0 0.0
    %2029 = vmatpush1.msra.mxu0 %v1938
    %2030 = vmatprep.subr.mxu0 0.0
    %2031 = vmatpush1.msra.mxu0 %v1939
    %2032 = vmatprep.subr.mxu0 0.0
    %2033 = vmatpush1.msra.mxu0 %v1940
    %2034 = vmatprep.subr.mxu0 0.0
    %2035 = vmatpush1.msra.mxu0 %v1941
    %2036 = vmatprep.subr.mxu0 0.0
    %2037 = vmatpush1.msra.mxu0 %v1942
    %2038 = vmatprep.subr.mxu0 0.0
    %2039 = vmatpush1.msra.mxu0 0.0
    %2040 = vmatprep.subr.mxu0 0.0
    %2041 = vmatpush1.msra.mxu0 0.0
    %2042 = vmatprep.subr.mxu0 0.0
    %2043 = vmatpush1.msra.mxu0 0.0
    %2044 = vmatprep.subr.mxu0 0.0
    %2045 = vmatpush1.msra.mxu0 0.0
    %2046 = vmatprep.subr.mxu0 0.0
    %2047 = vmatpush1.msra.mxu0 0.0
    %2048 = vmatprep.subr.mxu0 0.0
    %2049 = vmatpush1.msra.mxu0 0.0
    %2050 = vmatprep.subr.mxu0 0.0
    %2051 = vmatpush1.msra.mxu0 0.0
    %2052 = vmatprep.subr.mxu0 0.0
    %2053 = vmatpush1.msra.mxu0 0.0
    %2054 = vmatprep.subr.mxu0 0.0
    %2055 = vmatpush1.msra.mxu0 0.0
    %2056 = vmatprep.subr.mxu0 0.0
    %2057 = vmatpush1.msra.mxu0 0.0
    %2058 = vmatprep.subr.mxu0 0.0
    %2059 = vmatpush1.msra.mxu0 0.0
    %2060 = vmatprep.subr.mxu0 0.0
    %2061 = vmatpush1.msra.mxu0 0.0
    %2062 = vmatprep.subr.mxu0 0.0
    %2063 = vmatpush1.msra.mxu0 0.0
    %2064 = vmatprep.subr.mxu0 0.0
    %2065 = vmatpush1.msra.mxu0 0.0
    %2066 = vmatprep.subr.mxu0 0.0
    %2067 = vmatpush1.msra.mxu0 0.0
    %2068 = vmatprep.subr.mxu0 0.0
    %2069 = vmatpush1.msra.mxu0 0.0
    %2070 = vmatprep.subr.mxu0 0.0
    %2071 = vmatpush1.msra.mxu0 0.0
    %2072 = vmatprep.subr.mxu0 0.0
    %2073 = vmatpush1.msra.mxu0 0.0
    %2074 = vmatprep.subr.mxu0 0.0
    %2075 = vmatpush1.msra.mxu0 0.0
    %2076 = vmatprep.subr.mxu0 0.0
    %2077 = vmatpush1.msra.mxu0 0.0
    %2078 = vmatprep.subr.mxu0 0.0
    %2079 = vmatpush1.msra.mxu0 0.0
    %2080 = vmatprep.subr.mxu0 0.0
    %2081 = vmatpush1.msra.mxu0 0.0
    %2082 = vmatprep.subr.mxu0 0.0
    %2083 = vmatpush1.msra.mxu0 0.0
    %2084 = vmatprep.subr.mxu0 0.0
    %2085 = vmatpush1.msra.mxu0 0.0
    %2086 = vmatprep.subr.mxu0 0.0
    %2087 = vmatpush1.msra.mxu0 0.0
    %2088 = vmatprep.subr.mxu0 0.0
    %2089 = vmatpush1.msra.mxu0 0.0
    %2090 = vmatprep.mubr.f32.mxu0 0.0
    %2091 = vmatmul.mubr.f32.gmra.mrb[0].mxu0 %v1188
    %v2092 = vpop.f32.mrb[0].mxu0
    %v2093 = vadd.f32 %v2024, %v2092
    %v2094 = vpop.f32.mrb[0].mxu0
    %2095 = vmatprep.mubr.f32.mxu0 0.0
    %2096 = vmatmul.mubr.f32.gmra.mrb[0].mxu0 %v1191
    %v2097 = vpop.f32.mrb[0].mxu0
    %v2098 = vadd.f32 %v2025, %v2097
    %v2099 = vpop.f32.mrb[0].mxu0
    %2100 = vdwg.mxu0
    %v2101 = vadd.f32 %v390, %v1260
    %v2102 = vadd.f32 %v391, %v1265
    %v2103 = vadd.f32 %v2101, %v2093
    %v2104 = vadd.f32 %v2102, %v2098
    %v2105 = vsel %vm428, %v2103, 0.0
    %v2106 = vsel %vm428, %v2104, 0.0
    %v2107 = vadd.f32 %v2105, %v2106
    %v2108 = vrot.slane %v2107, 4
    %v2109 = vadd.f32 %v2107, %v2108
    %v2110 = vrot.slane %v2109, 2
    %v2111 = vadd.f32 %v2109, %v2110
    %v2112 = vrot.slane %v2111, 1
    %v2113 = vadd.f32 %v2111, %v2112
    %v2114 = vmul.f32 %v2113, %v84
    %s2115 = scalar_lea.vmem [#allocation2], 320
    %v2116 = vld [vmem:[%s2115] sm:$0xff]
    %v2117 = vld [vmem:[%s2115 + $0x8] sm:$0xff]
    %v2118 = vld [vmem:[%s2115 + $0x10] sm:$0xff]
    %v2119 = vld [vmem:[%s2115 + $0x18] sm:$0xff]
    %s2120 = scalar_lea.vmem %s7, 13
    %v2121 = vld [vmem:[%s2120] sm:$0x1]
    %v2123 = vsel %vm428, %v2114, 0
    %2125 = vmatprep.subr.mxu0 0.0
    %2126 = vmatpush1.msra.mxu0 %v2116
    %2127 = vmatprep.subr.mxu0 0.0
    %2128 = vmatpush1.msra.mxu0 %v2117
    %2129 = vmatprep.subr.mxu0 0.0
    %2130 = vmatpush1.msra.mxu0 %v2118
    %2131 = vmatprep.subr.mxu0 0.0
    %2132 = vmatpush1.msra.mxu0 %v2119
    %2133 = vmatprep.subr.mxu0 0.0
    %2134 = vmatpush1.msra.mxu0 0.0
    %2135 = vmatprep.subr.mxu0 0.0
    %2136 = vmatpush1.msra.mxu0 0.0
    %2137 = vmatprep.subr.mxu0 0.0
    %2138 = vmatpush1.msra.mxu0 0.0
    %2139 = vmatprep.subr.mxu0 0.0
    %2140 = vmatpush1.msra.mxu0 0.0
    %2141 = vmatprep.subr.mxu0 0.0
    %2142 = vmatpush1.msra.mxu0 0.0
    %2143 = vmatprep.subr.mxu0 0.0
    %2144 = vmatpush1.msra.mxu0 0.0
    %2145 = vmatprep.subr.mxu0 0.0
    %2146 = vmatpush1.msra.mxu0 0.0
    %2147 = vmatprep.subr.mxu0 0.0
    %2148 = vmatpush1.msra.mxu0 0.0
    %2149 = vmatprep.subr.mxu0 0.0
    %2150 = vmatpush1.msra.mxu0 0.0
    %2151 = vmatprep.subr.mxu0 0.0
    %2152 = vmatpush1.msra.mxu0 0.0
    %2153 = vmatprep.subr.mxu0 0.0
    %2154 = vmatpush1.msra.mxu0 0.0
    %2155 = vmatprep.subr.mxu0 0.0
    %2156 = vmatpush1.msra.mxu0 0.0
    %2157 = vmatprep.subr.mxu0 0.0
    %2158 = vmatpush1.msra.mxu0 0.0
    %2159 = vmatprep.subr.mxu0 0.0
    %2160 = vmatpush1.msra.mxu0 0.0
    %2161 = vmatprep.subr.mxu0 0.0
    %2162 = vmatpush1.msra.mxu0 0.0
    %2163 = vmatprep.subr.mxu0 0.0
    %2164 = vmatpush1.msra.mxu0 0.0
    %2165 = vmatprep.subr.mxu0 0.0
    %2166 = vmatpush1.msra.mxu0 0.0
    %2167 = vmatprep.subr.mxu0 0.0
    %2168 = vmatpush1.msra.mxu0 0.0
    %2169 = vmatprep.subr.mxu0 0.0
    %2170 = vmatpush1.msra.mxu0 0.0
    %2171 = vmatprep.subr.mxu0 0.0
    %2172 = vmatpush1.msra.mxu0 0.0
    %2173 = vmatprep.subr.mxu0 0.0
    %2174 = vmatpush1.msra.mxu0 0.0
    %2175 = vmatprep.subr.mxu0 0.0
    %2176 = vmatpush1.msra.mxu0 0.0
    %2177 = vmatprep.subr.mxu0 0.0
    %2178 = vmatpush1.msra.mxu0 0.0
    %2179 = vmatprep.subr.mxu0 0.0
    %2180 = vmatpush1.msra.mxu0 0.0
    %2181 = vmatprep.subr.mxu0 0.0
    %2182 = vmatpush1.msra.mxu0 0.0
    %2183 = vmatprep.subr.mxu0 0.0
    %2184 = vmatpush1.msra.mxu0 0.0
    %2185 = vmatprep.subr.mxu0 0.0
    %2186 = vmatpush1.msra.mxu0 0.0
    %2187 = vmatprep.subr.mxu0 0.0
    %2188 = vmatpush1.msra.mxu0 0.0
    %2189 = vmatprep.mubr.f32.mxu0 0.0
    %2190 = vmatmul.mubr.f32.gmra.mrb[0].mxu0 %v2123
    %v2191 = vpop.f32.mrb[0].mxu0
    %v2192 = vadd.f32 %v2121, %v2191
    %v2193 = vpop.f32.mrb[0].mxu0
    %2194 = vdwg.mxu0
    %vm2195 = vcmp.gt.f32.partialorder %v2192, 0.0
    %v2196 = vmin.f32 %v2192, 0.0
    %v2197 = vmul.f32 %v2196, 1.442695
    %v2198 = vpow.pop %v2197
    %v2199 = vsub.f32 %v2198, 1.0
    %v2200 = vmul.f32 %v2199, 1.6732632
    %v2201 = vsel %vm2195, %v2192, %v2200
    %v2202 = vmul.f32 %v2201, 1.050701
    %s2203 = scalar_lea.vmem [#allocation2], 352
    %v2204 = vld [vmem:[%s2203] sm:$0xff]
    %v2205 = vld [vmem:[%s2203 + $0x8] sm:$0xff]
    %v2206 = vld [vmem:[%s2203 + $0x10] sm:$0xff]
    %v2207 = vld [vmem:[%s2203 + $0x18] sm:$0xff]
    %s2208 = scalar_lea.vmem %s7, 14
    %v2209 = vld [vmem:[%s2208] sm:$0x1]
    %v2211 = vsel %vm428, %v2202, 0
    %2213 = vmatprep.subr.mxu0 0.0
    %2214 = vmatpush1.msra.mxu0 %v2204
    %2215 = vmatprep.subr.mxu0 0.0
    %2216 = vmatpush1.msra.mxu0 %v2205
    %2217 = vmatprep.subr.mxu0 0.0
    %2218 = vmatpush1.msra.mxu0 %v2206
    %2219 = vmatprep.subr.mxu0 0.0
    %2220 = vmatpush1.msra.mxu0 %v2207
    %2221 = vmatprep.subr.mxu0 0.0
    %2222 = vmatpush1.msra.mxu0 0.0
    %2223 = vmatprep.subr.mxu0 0.0
    %2224 = vmatpush1.msra.mxu0 0.0
    %2225 = vmatprep.subr.mxu0 0.0
    %2226 = vmatpush1.msra.mxu0 0.0
    %2227 = vmatprep.subr.mxu0 0.0
    %2228 = vmatpush1.msra.mxu0 0.0
    %2229 = vmatprep.subr.mxu0 0.0
    %2230 = vmatpush1.msra.mxu0 0.0
    %2231 = vmatprep.subr.mxu0 0.0
    %2232 = vmatpush1.msra.mxu0 0.0
    %2233 = vmatprep.subr.mxu0 0.0
    %2234 = vmatpush1.msra.mxu0 0.0
    %2235 = vmatprep.subr.mxu0 0.0
    %2236 = vmatpush1.msra.mxu0 0.0
    %2237 = vmatprep.subr.mxu0 0.0
    %2238 = vmatpush1.msra.mxu0 0.0
    %2239 = vmatprep.subr.mxu0 0.0
    %2240 = vmatpush1.msra.mxu0 0.0
    %2241 = vmatprep.subr.mxu0 0.0
    %2242 = vmatpush1.msra.mxu0 0.0
    %2243 = vmatprep.subr.mxu0 0.0
    %2244 = vmatpush1.msra.mxu0 0.0
    %2245 = vmatprep.subr.mxu0 0.0
    %2246 = vmatpush1.msra.mxu0 0.0
    %2247 = vmatprep.subr.mxu0 0.0
    %2248 = vmatpush1.msra.mxu0 0.0
    %2249 = vmatprep.subr.mxu0 0.0
    %2250 = vmatpush1.msra.mxu0 0.0
    %2251 = vmatprep.subr.mxu0 0.0
    %2252 = vmatpush1.msra.mxu0 0.0
    %2253 = vmatprep.subr.mxu0 0.0
    %2254 = vmatpush1.msra.mxu0 0.0
    %2255 = vmatprep.subr.mxu0 0.0
    %2256 = vmatpush1.msra.mxu0 0.0
    %2257 = vmatprep.subr.mxu0 0.0
    %2258 = vmatpush1.msra.mxu0 0.0
    %2259 = vmatprep.subr.mxu0 0.0
    %2260 = vmatpush1.msra.mxu0 0.0
    %2261 = vmatprep.subr.mxu0 0.0
    %2262 = vmatpush1.msra.mxu0 0.0
    %2263 = vmatprep.subr.mxu0 0.0
    %2264 = vmatpush1.msra.mxu0 0.0
    %2265 = vmatprep.subr.mxu0 0.0
    %2266 = vmatpush1.msra.mxu0 0.0
    %2267 = vmatprep.subr.mxu0 0.0
    %2268 = vmatpush1.msra.mxu0 0.0
    %2269 = vmatprep.subr.mxu0 0.0
    %2270 = vmatpush1.msra.mxu0 0.0
    %2271 = vmatprep.subr.mxu0 0.0
    %2272 = vmatpush1.msra.mxu0 0.0
    %2273 = vmatprep.subr.mxu0 0.0
    %2274 = vmatpush1.msra.mxu0 0.0
    %2275 = vmatprep.subr.mxu0 0.0
    %2276 = vmatpush1.msra.mxu0 0.0
    %2277 = vmatprep.mubr.f32.mxu0 0.0
    %2278 = vmatmul.mubr.f32.gmra.mrb[0].mxu0 %v2211
    %v2279 = vpop.f32.mrb[0].mxu0
    %v2280 = vadd.f32 %v2209, %v2279
    %v2281 = vpop.f32.mrb[0].mxu0
    %2282 = vdwg.mxu0
    %vm2283 = vcmp.gt.f32.partialorder %v2280, 0.0
    %v2284 = vmin.f32 %v2280, 0.0
    %v2285 = vmul.f32 %v2284, 1.442695
    %v2286 = vpow.pop %v2285
    %v2287 = vsub.f32 %v2286, 1.0
    %v2288 = vmul.f32 %v2287, 1.6732632
    %v2289 = vsel %vm2283, %v2280, %v2288
    %v2290 = vmul.f32 %v2289, 1.050701
    %v2291 = vld [vmem:[%s8] sm:$0xff]
    %v2292 = vld [vmem:[%s8 + $0x8] sm:$0xff]
    %v2293 = vld [vmem:[%s8 + $0x10] sm:$0xff]
    %v2294 = vld [vmem:[%s8 + $0x18] sm:$0xff]
    %v2295 = vld [vmem:[%s9] sm:$0x1]
    %v2297 = vsel %vm428, %v2290, 0
    %2299 = vmatprep.subr.mxu0 0.0
    %2300 = vmatpush1.msra.mxu0 %v2291
    %2301 = vmatprep.subr.mxu0 0.0
    %2302 = vmatpush1.msra.mxu0 %v2292
    %2303 = vmatprep.subr.mxu0 0.0
    %2304 = vmatpush1.msra.mxu0 %v2293
    %2305 = vmatprep.subr.mxu0 0.0
    %2306 = vmatpush1.msra.mxu0 %v2294
    %2307 = vmatprep.subr.mxu0 0.0
    %2308 = vmatpush1.msra.mxu0 0.0
    %2309 = vmatprep.subr.mxu0 0.0
    %2310 = vmatpush1.msra.mxu0 0.0
    %2311 = vmatprep.subr.mxu0 0.0
    %2312 = vmatpush1.msra.mxu0 0.0
    %2313 = vmatprep.subr.mxu0 0.0
    %2314 = vmatpush1.msra.mxu0 0.0
    %2315 = vmatprep.subr.mxu0 0.0
    %2316 = vmatpush1.msra.mxu0 0.0
    %2317 = vmatprep.subr.mxu0 0.0
    %2318 = vmatpush1.msra.mxu0 0.0
    %2319 = vmatprep.subr.mxu0 0.0
    %2320 = vmatpush1.msra.mxu0 0.0
    %2321 = vmatprep.subr.mxu0 0.0
    %2322 = vmatpush1.msra.mxu0 0.0
    %2323 = vmatprep.subr.mxu0 0.0
    %2324 = vmatpush1.msra.mxu0 0.0
    %2325 = vmatprep.subr.mxu0 0.0
    %2326 = vmatpush1.msra.mxu0 0.0
    %2327 = vmatprep.subr.mxu0 0.0
    %2328 = vmatpush1.msra.mxu0 0.0
    %2329 = vmatprep.subr.mxu0 0.0
    %2330 = vmatpush1.msra.mxu0 0.0
    %2331 = vmatprep.subr.mxu0 0.0
    %2332 = vmatpush1.msra.mxu0 0.0
    %2333 = vmatprep.subr.mxu0 0.0
    %2334 = vmatpush1.msra.mxu0 0.0
    %2335 = vmatprep.subr.mxu0 0.0
    %2336 = vmatpush1.msra.mxu0 0.0
    %2337 = vmatprep.subr.mxu0 0.0
    %2338 = vmatpush1.msra.mxu0 0.0
    %2339 = vmatprep.subr.mxu0 0.0
    %2340 = vmatpush1.msra.mxu0 0.0
    %2341 = vmatprep.subr.mxu0 0.0
    %2342 = vmatpush1.msra.mxu0 0.0
    %2343 = vmatprep.subr.mxu0 0.0
    %2344 = vmatpush1.msra.mxu0 0.0
    %2345 = vmatprep.subr.mxu0 0.0
    %2346 = vmatpush1.msra.mxu0 0.0
    %2347 = vmatprep.subr.mxu0 0.0
    %2348 = vmatpush1.msra.mxu0 0.0
    %2349 = vmatprep.subr.mxu0 0.0
    %2350 = vmatpush1.msra.mxu0 0.0
    %2351 = vmatprep.subr.mxu0 0.0
    %2352 = vmatpush1.msra.mxu0 0.0
    %2353 = vmatprep.subr.mxu0 0.0
    %2354 = vmatpush1.msra.mxu0 0.0
    %2355 = vmatprep.subr.mxu0 0.0
    %2356 = vmatpush1.msra.mxu0 0.0
    %2357 = vmatprep.subr.mxu0 0.0
    %2358 = vmatpush1.msra.mxu0 0.0
    %2359 = vmatprep.subr.mxu0 0.0
    %2360 = vmatpush1.msra.mxu0 0.0
    %2361 = vmatprep.subr.mxu0 0.0
    %2362 = vmatpush1.msra.mxu0 0.0
    %2363 = vmatprep.mubr.f32.mxu0 0.0
    %2364 = vmatmul.mubr.f32.gmra.mrb[0].mxu0 %v2297
    %v2365 = vpop.f32.mrb[0].mxu0
    %v2366 = vadd.f32 %v2295, %v2365
    %v2367 = vpop.f32.mrb[0].mxu0
    %2368 = vdwg.mxu0
    %vm2369 = vcmask 1040384
    %v2370 = vsel %vm2369, %v2366, -inf
    %2371 = vmax.xlane.f32.xlu0 %v2370
    %v2372 = vpop.xlane.xlu0 %2371
    %v2373 = vsub.f32 %v2366, %v2372
    %v2374 = vmul.f32 %v2373, 1.442695
    %v2375 = vpow.pop %v2374
    %v2376 = vsel %vm2369, %v2375, 0.0
    %2377 = vadd.xlane.f32.xlu0 %v2376
    %v2378 = vpop.xlane.xlu0 %2377
    %v2379 = vlog2.pop %v2378
    %v2380 = vmul.f32 %v2379, 0.6931472
    %v2381 = vsub.f32 %v2373, %v2380
    %2382 = vst [vmem:[#allocation5] sm:$0x1] %v2381
    // Predicated region
    $region46: #{fwd.1} parent=1 // pred_check
      _
    $region47: #{fwd.1} parent=1 // pred_check_branch
      %2384 = sbr.rel (0) target = $region49
    $region48: #{fwd.1} parent=1 // pred_region
      %s2386 = ssub.s32 16, 16
      %2387 = vsyncadd [#allocation4], %s2386
      %s2389 = sshll.u32 [#allocation5], 4
      %s2390 = int_to_ptr.vmem [resolvable:$true] %s2389
      %2392 = dma.vmem_to_hbm [thread:$0]  %s2390, 16, %s10, [#allocation4]
    $region49: #{fwd.1} parent=1 // pred_fallthru
      _
    // Predicated region
    $region50: #{fwd.1} parent=1 // pred_check
      _
    $region51: #{fwd.1} parent=1 // pred_check_branch
      %2394 = sbr.rel (0) target = $region53
    $region52: #{fwd.1} parent=1 // pred_region
      %2395 = dma.done [#allocation4], 16
    $region53: #{fwd.1} parent=1 // pred_fallthru
      _
    %2396 = vsyncpa [#allocation3], 1
    %2397 = vsyncpa [#allocation4], 1

</llo_original>
